<compile_context>
chip_gen: v7x
topology: tpu7x:2x2x1
jax: 0.10.0
libtpu: 0.0.40
codegen_flags: <defaults>
</compile_context>

<pallas_src>
import functools

import jax
import jax.numpy as jnp
from jax.experimental import pallas as pl
from jax.experimental.pallas import tpu as pltpu

LANE = 128


def _round_up(x, m):
    return (x + m - 1) // m * m


# ---------------------------------------------------------------------------
# Fused kernel.  Grid = (B, num_HW_tiles); HW axis is a reduction ("arbitrary").
# ---------------------------------------------------------------------------
def _dann_kernel(p_ref, wc_ref, bc_ref, wh_ref, bh_ref, w2_ref, b2_ref,
                 feat_ref, pred_ref, adv_ref,
                 acc_ref, *, inv_hw, pad_rows):
    t = pl.program_id(1)
    nt = pl.num_programs(1)

    @pl.when(t == 0)
    def _init():
        acc_ref[...] = jnp.zeros_like(acc_ref)

    # 3x3 conv for this spatial tile of this batch element as an im2col matmul
    # (bf16 operands, f32 MXU accumulation), then bias + ReLU.
    x = jnp.dot(p_ref[0], wc_ref[...], preferred_element_type=jnp.float32)
    x = jnp.maximum(x + bc_ref[...], 0.0)                        # (tm, Np)

    # Partial sum for adaptive_avg_pool2d(feat, 1)
    acc_ref[...] += jnp.sum(x, axis=0, keepdims=True)            # (1, Np)

    @pl.when(t == nt - 1)
    def _finalize():
        feat = acc_ref[...] * inv_hw                             # mean over H*W
        if pad_rows:  # ragged HW: padded patch rows each added exactly relu(b)
            feat = feat - jnp.maximum(bc_ref[...], 0.0) * (pad_rows * inv_hw)
        feat_ref[0] = feat
        fb = feat.astype(wh_ref.dtype)

        # Fused heads: [Classifier | Discriminator.fc1] in one matmul.
        y = (jnp.dot(fb, wh_ref[...], preferred_element_type=jnp.float32)
             + bh_ref[...])                                      # (1, 128+Hdp)
        # Classifier; torch.sigmoid(out / 5) == sigmoid(out * 0.2)
        pred_ref[0] = jax.nn.sigmoid(y[:, :LANE] * 0.2)
        # Discriminator: GRL (identity fwd) -> fc1 -> ReLU -> Dropout(eval) -> fc2
        h = jnp.maximum(y[:, LANE:], 0.0).astype(w2_ref.dtype)
        adv_ref[0] = (jnp.dot(h, w2_ref[...],
                              preferred_element_type=jnp.float32) + b2_ref[...])


# ---------------------------------------------------------------------------
# Host-side operand prep (cheap, layout-friendly)
# ---------------------------------------------------------------------------
def _im2col_nhwc_3x3(img_nchw):
    """NCHW image -> (B, H*W, 9*C) patches, columns ordered (kh, kw, c)."""
    x = jnp.transpose(img_nchw, (0, 2, 3, 1))                    # NHWC
    B, H, W, C = x.shape
    xp = jnp.pad(x, ((0, 0), (1, 1), (1, 1), (0, 0)))
    cols = [xp[:, kh:kh + H, kw:kw + W, :] for kh in range(3) for kw in range(3)]
    p = jnp.concatenate(cols, axis=-1)                           # (B, H, W, 9C)
    return p.reshape(B, H * W, 9 * C)


@functools.partial(jax.jit, static_argnames=("tm_target",))
def dann_fused_forward(img, params, *, tm_target=512):
    """Whole eval-mode DANN forward in a single pallas_call."""
    B, C, H, W = img.shape
    HW = H * W
    K = 9 * C
    Cout = params["w_conv"].shape[0]
    Np = _round_up(Cout, LANE)                 # lane-dense feature width
    adv_hidden = params["w_fc1"].shape[1]
    adv_dim = params["w_fc2"].shape[1]
    cls_dim = params["w_cls"].shape[1]
    Hdp = _round_up(adv_hidden, LANE)
    HEADW = LANE + Hdp                         # [classifier | fc1] fused width

    # Spatial tiling: big tiles over the per-batch HW reduction axis.
    tm = min(tm_target, _round_up(HW, 16))
    HWp = _round_up(HW, tm)
    nt = HWp // tm
    pad_rows = HWp - HW

    # Patches: NHWC im2col, zero-pad ragged spatial rows, bf16 for the MXU.
    patches = _im2col_nhwc_3x3(img)
    if pad_rows:
        patches = jnp.pad(patches, ((0, 0), (0, pad_rows), (0, 0)))
    patches = patches.astype(jnp.bfloat16)

    # Conv weight (Cout, Cin, 3, 3) -> (9*Cin, Np), rows ordered (kh, kw, c),
    # output channels zero-padded to 128 lanes.
    wmat = params["w_conv"].transpose(2, 3, 1, 0).reshape(K, Cout)
    wmat = jnp.pad(wmat, ((0, 0), (0, Np - Cout))).astype(jnp.bfloat16)
    bconv = jnp.pad(params["b_conv"], (0, Np - Cout)).reshape(1, Np)

    # Fused head weights: [classifier | fc1], zero-padded to lane-dense widths.
    wcls = jnp.pad(params["w_cls"], ((0, Np - Cout), (0, LANE - cls_dim)))
    w1 = jnp.pad(params["w_fc1"], ((0, Np - Cout), (0, Hdp - adv_hidden)))
    wheads = jnp.concatenate([wcls, w1], axis=1).astype(jnp.bfloat16)   # (Np, HEADW)
    bcls = jnp.pad(params["b_cls"], (0, LANE - cls_dim))
    b1 = jnp.pad(params["b_fc1"], (0, Hdp - adv_hidden))
    bheads = jnp.concatenate([bcls, b1]).reshape(1, HEADW)

    w2 = jnp.pad(params["w_fc2"],
                 ((0, Hdp - adv_hidden), (0, LANE - adv_dim))).astype(jnp.bfloat16)
    b2 = jnp.pad(params["b_fc2"], (0, LANE - adv_dim)).reshape(1, LANE)

    kernel = functools.partial(_dann_kernel, inv_hw=1.0 / HW, pad_rows=pad_rows)
    const = lambda b, t: (0, 0)

    feat_p, pred_p, adv_p = pl.pallas_call(
        kernel,
        out_shape=(
            jax.ShapeDtypeStruct((B, 1, Np), jnp.float32),    # pooled feature
            jax.ShapeDtypeStruct((B, 1, LANE), jnp.float32),  # sigmoid(cls/5)
            jax.ShapeDtypeStruct((B, 1, LANE), jnp.float32),  # discriminator
        ),
        grid_spec=pltpu.PrefetchScalarGridSpec(
            num_scalar_prefetch=0,
            grid=(B, nt),
            in_specs=[
                pl.BlockSpec((1, tm, K), lambda b, t: (b, t, 0)),   # patches
                pl.BlockSpec((K, Np), const),                       # conv W
                pl.BlockSpec((1, Np), const),                       # conv b
                pl.BlockSpec((Np, HEADW), const),                   # [cls|fc1] W
                pl.BlockSpec((1, HEADW), const),                    # [cls|fc1] b
                pl.BlockSpec((Hdp, LANE), const),                   # fc2 W
                pl.BlockSpec((1, LANE), const),                     # fc2 b
            ],
            out_specs=[
                pl.BlockSpec((1, 1, Np), lambda b, t: (b, 0, 0)),
                pl.BlockSpec((1, 1, LANE), lambda b, t: (b, 0, 0)),
                pl.BlockSpec((1, 1, LANE), lambda b, t: (b, 0, 0)),
            ],
            scratch_shapes=[pltpu.VMEM((1, Np), jnp.float32)],
        ),
        compiler_params=pltpu.CompilerParams(
            dimension_semantics=("parallel", "arbitrary"),
            vmem_limit_bytes=32 * 1024 * 1024),
    )(patches, wmat, bconv, wheads, bheads, w2, b2)

    pred = pred_p[:, 0, 0]
    feat = feat_p[:, 0, :Cout]
    adv = adv_p[:, 0, :adv_dim]
    return pred, feat, adv


# ---------------------------------------------------------------------------
# Parameter init (deterministic, mirrors the module's __init__ init schemes)
# ---------------------------------------------------------------------------
def init_params(key, cin, cout, feat_dim=(32, 1), adv_hidden=512, adv_out=3):
    ks = jax.random.split(key, 4)
    return dict(
        # stand-in encoder conv (the real encoder is config-driven)
        w_conv=0.1 * jax.random.normal(ks[0], (cout, cin, 3, 3), jnp.float32),
        b_conv=jnp.zeros((cout,), jnp.float32),
        # Classifier: weight ~ N(0, 0.01), bias = 0   (stored as (in, out))
        w_cls=0.01 * jax.random.normal(ks[1], (feat_dim[0], feat_dim[1]), jnp.float32),
        b_cls=jnp.zeros((feat_dim[1],), jnp.float32),
        # Discriminator fc1: weight ~ N(0, 0.01), bias = 0
        w_fc1=0.01 * jax.random.normal(ks[2], (feat_dim[0], adv_hidden), jnp.float32),
        b_fc1=jnp.zeros((adv_hidden,), jnp.float32),
        # Discriminator fc2: weight ~ N(0, 0.3), bias = 0
        w_fc2=0.3 * jax.random.normal(ks[3], (adv_hidden, adv_out), jnp.float32),
        b_fc2=jnp.zeros((adv_out,), jnp.float32),
    )


def dann_forward(img, label, params, return_label=True, return_feature=True):
    """Eval-mode DANN.forward."""
    pred, feat, adv = dann_fused_forward(img, params)
    output = [pred]
    if return_label:
        output.append(label)
    if return_feature:
        output.append(feat)
    # adv (Discriminator output) is only consumed by the training-mode losses.
    return output, adv


def _dann_reference(img, params):
    """Pure-JAX (f32, plain XLA) reference of the eval-mode forward."""
    y = jax.lax.conv_general_dilated(
        img, params["w_conv"], window_strides=(1, 1), padding="SAME",
        dimension_numbers=("NCHW", "OIHW", "NCHW"))
    y = jnp.maximum(y + params["b_conv"][None, :, None, None], 0.0)
    feat = y.mean(axis=(2, 3))
    cls = feat @ params["w_cls"] + params["b_cls"]
    pred = jax.nn.sigmoid(cls / 5.0)[:, 0]
    h = jnp.maximum(feat @ params["w_fc1"] + params["b_fc1"], 0.0)
    adv = h @ params["w_fc2"] + params["b_fc2"]
    return pred, feat, adv


if __name__ == "__main__":
    key = jax.random.PRNGKey(0)
    k_img, k_param = jax.random.split(key)

    B, Cin, H, W = 2, 4, 16, 16
    FEAT = 32            # stand-in for the 2048-dim encoder feature
    img = jax.random.normal(k_img, (B, Cin, H, W), jnp.float32)
    label = jnp.zeros((B, 1), jnp.int32)

    params = init_params(k_param, Cin, FEAT, feat_dim=(FEAT, 1),
                         adv_hidden=512, adv_out=3)

    output, adv = dann_forward(img, label, params)
    jax.block_until_ready((output, adv))

    pred, lbl, feat = output
    assert pred.shape == (B,)
    assert feat.shape == (B, FEAT)
    assert adv.shape == (B, 3)

    # numerical sanity check vs the plain-JAX f32 reference (bf16 tolerance)
    pred_r, feat_r, adv_r = _dann_reference(img, params)
    for got, want in ((pred, pred_r), (feat, feat_r), (adv, adv_r)):
        err = float(jnp.max(jnp.abs(got - want)))
        assert err < 5e-2, f"mismatch vs reference: {err}"

    print("KERNEL_OK")
</pallas_src>

<mosaic_0001>
module attributes {stable_mosaic.version = 11 : i64} {
  func.func @_dann_kernel(%arg0: i32, %arg1: i32, %arg2: memref<1x256x36xbf16, #tpu.memory_space<vmem>>, %arg3: memref<36x128xbf16, #tpu.memory_space<vmem>>, %arg4: memref<1x128xf32, #tpu.memory_space<vmem>>, %arg5: memref<128x640xbf16, #tpu.memory_space<vmem>>, %arg6: memref<1x640xf32, #tpu.memory_space<vmem>>, %arg7: memref<512x128xbf16, #tpu.memory_space<vmem>>, %arg8: memref<1x128xf32, #tpu.memory_space<vmem>>, %arg9: memref<1x1x128xf32, #tpu.memory_space<vmem>>, %arg10: memref<1x1x128xf32, #tpu.memory_space<vmem>>, %arg11: memref<1x1x128xf32, #tpu.memory_space<vmem>>, %arg12: memref<1x128xf32, #tpu.memory_space<vmem>>) attributes {dimension_semantics = [#tpu.dimension_semantics<parallel>, #tpu.dimension_semantics<arbitrary>], iteration_bounds = array<i64: 2, 1>, scalar_prefetch = 0 : i64, scratch_operands = 1 : i64, tpu.core_type = #tpu.core_type<tc>, window_params = [{transform_indices = @transform_0, window_bounds = array<i64: 1, 256, 36>}, {pipeline_mode = #tpu.pipeline_mode<synchronous>, transform_indices = @transform_1, window_bounds = array<i64: 36, 128>}, {pipeline_mode = #tpu.pipeline_mode<synchronous>, transform_indices = @transform_2, window_bounds = array<i64: 1, 128>}, {pipeline_mode = #tpu.pipeline_mode<synchronous>, transform_indices = @transform_3, window_bounds = array<i64: 128, 640>}, {pipeline_mode = #tpu.pipeline_mode<synchronous>, transform_indices = @transform_4, window_bounds = array<i64: 1, 640>}, {pipeline_mode = #tpu.pipeline_mode<synchronous>, transform_indices = @transform_5, window_bounds = array<i64: 512, 128>}, {pipeline_mode = #tpu.pipeline_mode<synchronous>, transform_indices = @transform_6, window_bounds = array<i64: 1, 128>}, {transform_indices = @transform_7, window_bounds = array<i64: 1, 1, 128>}, {transform_indices = @transform_8, window_bounds = array<i64: 1, 1, 128>}, {transform_indices = @transform_9, window_bounds = array<i64: 1, 1, 128>}]} {
    %c0_i32 = arith.constant 0 : i32
    %0 = arith.cmpi eq, %arg1, %c0_i32 : i32
    %1 = arith.extui %0 : i1 to i32
    %c0_i32_0 = arith.constant 0 : i32
    %2 = arith.cmpi ne, %1, %c0_i32_0 : i32
    scf.if %2 {
      %cst_15 = arith.constant 0.000000e+00 : f32
      %20 = vector.broadcast %cst_15 : f32 to vector<1x128xf32>
      %c0_16 = arith.constant 0 : index
      %c0_17 = arith.constant 0 : index
      %21 = vector.load %arg12[%c0_16, %c0_17] : memref<1x128xf32, #tpu.memory_space<vmem>>, vector<1x128xf32>
      tpu.vector_store %arg12[%c0_16, %c0_17], %20 {strides = array<i32>} : memref<1x128xf32, #tpu.memory_space<vmem>>, vector<1x128xf32>,
    } else {
    }
    %c0 = arith.constant 0 : index
    %c0_1 = arith.constant 0 : index
    %c0_2 = arith.constant 0 : index
    %3 = vector.load %arg2[%c0, %c0_1, %c0_2] : memref<1x256x36xbf16, #tpu.memory_space<vmem>>, vector<1x256x36xbf16>
    %4 = vector.shape_cast %3 : vector<1x256x36xbf16> to vector<256x36xbf16>
    %c0_3 = arith.constant 0 : index
    %c0_4 = arith.constant 0 : index
    %5 = vector.load %arg3[%c0_3, %c0_4] : memref<36x128xbf16, #tpu.memory_space<vmem>>, vector<36x128xbf16>
    %cst = arith.constant dense<0.000000e+00> : vector<256x128xf32>
    %6 = tpu.matmul %4, %5, %cst {dimension_numbers = #tpu.dot_dimension_numbers<[1], [0], [0], [1], [0, 0, 1, 1], [], []>} : vector<256x36xbf16>, vector<36x128xbf16>, vector<256x128xf32> -> vector<256x128xf32>
    %c0_5 = arith.constant 0 : index
    %c0_6 = arith.constant 0 : index
    %7 = vector.load %arg4[%c0_5, %c0_6] : memref<1x128xf32, #tpu.memory_space<vmem>>, vector<1x128xf32>
    %8 = vector.broadcast %7 : vector<1x128xf32> to vector<256x128xf32>
    %9 = arith.addf %6, %8 : vector<256x128xf32>
    %cst_7 = arith.constant 0.000000e+00 : f32
    %10 = vector.broadcast %cst_7 : f32 to vector<256x128xf32>
    %11 = arith.maximumf %9, %10 : vector<256x128xf32>
    %c0_8 = arith.constant 0 : index
    %c0_9 = arith.constant 0 : index
    %12 = vector.load %arg12[%c0_8, %c0_9] : memref<1x128xf32, #tpu.memory_space<vmem>>, vector<1x128xf32>
    %cst_10 = arith.constant dense<0.000000e+00> : vector<128xf32>
    %13 = vector.multi_reduction <add>, %11, %cst_10 [0] : vector<256x128xf32> to vector<128xf32>
    %14 = vector.shape_cast %13 : vector<128xf32> to vector<1x128xf32>
    %15 = arith.addf %12, %14 : vector<1x128xf32>
    %c0_11 = arith.constant 0 : index
    %c0_12 = arith.constant 0 : index
    %16 = vector.load %arg12[%c0_11, %c0_12] : memref<1x128xf32, #tpu.memory_space<vmem>>, vector<1x128xf32>
    tpu.vector_store %arg12[%c0_11, %c0_12], %15 {strides = array<i32>} : memref<1x128xf32, #tpu.memory_space<vmem>>, vector<1x128xf32>,
    %c0_i32_13 = arith.constant 0 : i32
    %17 = arith.cmpi eq, %arg1, %c0_i32_13 : i32
    %18 = arith.extui %17 : i1 to i32
    %c0_i32_14 = arith.constant 0 : i32
    %19 = arith.cmpi ne, %18, %c0_i32_14 : i32
    scf.if %19 {
      %c0_15 = arith.constant 0 : index
      %c0_16 = arith.constant 0 : index
      %20 = vector.load %arg12[%c0_15, %c0_16] : memref<1x128xf32, #tpu.memory_space<vmem>>, vector<1x128xf32>
      %cst_17 = arith.constant 3.906250e-03 : f32
      %21 = vector.broadcast %cst_17 : f32 to vector<1x128xf32>
      %22 = arith.mulf %20, %21 : vector<1x128xf32>
      %c0_18 = arith.constant 0 : index
      %c0_19 = arith.constant 0 : index
      %c0_20 = arith.constant 0 : index
      %23 = vector.load %arg9[%c0_18, %c0_19, %c0_20] : memref<1x1x128xf32, #tpu.memory_space<vmem>>, vector<1x1x128xf32>
      %24 = vector.shape_cast %23 : vector<1x1x128xf32> to vector<1x128xf32>
      %25 = vector.shape_cast %22 : vector<1x128xf32> to vector<1x1x128xf32>
      tpu.vector_store %arg9[%c0_18, %c0_19, %c0_20], %25 {strides = array<i32>} : memref<1x1x128xf32, #tpu.memory_space<vmem>>, vector<1x1x128xf32>,
      %26 = arith.truncf %22 : vector<1x128xf32> to vector<1x128xbf16>
      %c0_21 = arith.constant 0 : index
      %c0_22 = arith.constant 0 : index
      %27 = vector.load %arg5[%c0_21, %c0_22] : memref<128x640xbf16, #tpu.memory_space<vmem>>, vector<128x640xbf16>
      %cst_23 = arith.constant dense<0.000000e+00> : vector<1x640xf32>
      %28 = tpu.matmul %26, %27, %cst_23 {dimension_numbers = #tpu.dot_dimension_numbers<[1], [0], [0], [1], [0, 0, 1, 1], [], []>} : vector<1x128xbf16>, vector<128x640xbf16>, vector<1x640xf32> -> vector<1x640xf32>
      %c0_24 = arith.constant 0 : index
      %c0_25 = arith.constant 0 : index
      %29 = vector.load %arg6[%c0_24, %c0_25] : memref<1x640xf32, #tpu.memory_space<vmem>>, vector<1x640xf32>
      %30 = arith.addf %28, %29 : vector<1x640xf32>
      %31 = vector.extract_strided_slice %30 {offsets = [0, 0], sizes = [1, 128], strides = [1, 1]} : vector<1x640xf32> to vector<1x128xf32>
      %cst_26 = arith.constant 2.000000e-01 : f32
      %32 = vector.broadcast %cst_26 : f32 to vector<1x128xf32>
      %33 = arith.mulf %31, %32 : vector<1x128xf32>
      %34 = arith.negf %33 : vector<1x128xf32>
      %35 = math.exp %34 : vector<1x128xf32>
      %cst_27 = arith.constant 1.000000e+00 : f32
      %36 = vector.broadcast %cst_27 : f32 to vector<1x128xf32>
      %37 = arith.addf %36, %35 : vector<1x128xf32>
      %38 = arith.divf %36, %37 : vector<1x128xf32>
      %c0_28 = arith.constant 0 : index
      %c0_29 = arith.constant 0 : index
      %c0_30 = arith.constant 0 : index
      %39 = vector.load %arg10[%c0_28, %c0_29, %c0_30] : memref<1x1x128xf32, #tpu.memory_space<vmem>>, vector<1x1x128xf32>
      %40 = vector.shape_cast %39 : vector<1x1x128xf32> to vector<1x128xf32>
      %41 = vector.shape_cast %38 : vector<1x128xf32> to vector<1x1x128xf32>
      tpu.vector_store %arg10[%c0_28, %c0_29, %c0_30], %41 {strides = array<i32>} : memref<1x1x128xf32, #tpu.memory_space<vmem>>, vector<1x1x128xf32>,
      %42 = vector.extract_strided_slice %30 {offsets = [0, 128], sizes = [1, 512], strides = [1, 1]} : vector<1x640xf32> to vector<1x512xf32>
      %cst_31 = arith.constant 0.000000e+00 : f32
      %43 = vector.broadcast %cst_31 : f32 to vector<1x512xf32>
      %44 = arith.maximumf %42, %43 : vector<1x512xf32>
      %45 = arith.truncf %44 : vector<1x512xf32> to vector<1x512xbf16>
      %c0_32 = arith.constant 0 : index
      %c0_33 = arith.constant 0 : index
      %46 = vector.load %arg7[%c0_32, %c0_33] : memref<512x128xbf16, #tpu.memory_space<vmem>>, vector<512x128xbf16>
      %cst_34 = arith.constant dense<0.000000e+00> : vector<1x128xf32>
      %47 = tpu.matmul %45, %46, %cst_34 {dimension_numbers = #tpu.dot_dimension_numbers<[1], [0], [0], [1], [0, 0, 1, 1], [], []>} : vector<1x512xbf16>, vector<512x128xbf16>, vector<1x128xf32> -> vector<1x128xf32>
      %c0_35 = arith.constant 0 : index
      %c0_36 = arith.constant 0 : index
      %48 = vector.load %arg8[%c0_35, %c0_36] : memref<1x128xf32, #tpu.memory_space<vmem>>, vector<1x128xf32>
      %49 = arith.addf %47, %48 : vector<1x128xf32>
      %c0_37 = arith.constant 0 : index
      %c0_38 = arith.constant 0 : index
      %c0_39 = arith.constant 0 : index
      %50 = vector.load %arg11[%c0_37, %c0_38, %c0_39] : memref<1x1x128xf32, #tpu.memory_space<vmem>>, vector<1x1x128xf32>
      %51 = vector.shape_cast %50 : vector<1x1x128xf32> to vector<1x128xf32>
      %52 = vector.shape_cast %49 : vector<1x128xf32> to vector<1x1x128xf32>
      tpu.vector_store %arg11[%c0_37, %c0_38, %c0_39], %52 {strides = array<i32>} : memref<1x1x128xf32, #tpu.memory_space<vmem>>, vector<1x1x128xf32>,
    } else {
    }
    return
  }
  func.func @transform_0(%arg0: i32, %arg1: i32) -> (i32, i32, i32) {
    %c0_i32 = arith.constant 0 : i32
    %c0_i32_0 = arith.constant 0 : i32
    return %arg0, %arg1, %c0_i32 : i32, i32, i32
  }
  func.func @transform_1(%arg0: i32, %arg1: i32) -> (i32, i32) {
    %c0_i32 = arith.constant 0 : i32
    %c0_i32_0 = arith.constant 0 : i32
    %c0_i32_1 = arith.constant 0 : i32
    return %c0_i32, %c0_i32_0 : i32, i32
  }
  func.func @transform_2(%arg0: i32, %arg1: i32) -> (i32, i32) {
    %c0_i32 = arith.constant 0 : i32
    %c0_i32_0 = arith.constant 0 : i32
    %c0_i32_1 = arith.constant 0 : i32
    return %c0_i32, %c0_i32_0 : i32, i32
  }
  func.func @transform_3(%arg0: i32, %arg1: i32) -> (i32, i32) {
    %c0_i32 = arith.constant 0 : i32
    %c0_i32_0 = arith.constant 0 : i32
    %c0_i32_1 = arith.constant 0 : i32
    return %c0_i32, %c0_i32_0 : i32, i32
  }
  func.func @transform_4(%arg0: i32, %arg1: i32) -> (i32, i32) {
    %c0_i32 = arith.constant 0 : i32
    %c0_i32_0 = arith.constant 0 : i32
    %c0_i32_1 = arith.constant 0 : i32
    return %c0_i32, %c0_i32_0 : i32, i32
  }
  func.func @transform_5(%arg0: i32, %arg1: i32) -> (i32, i32) {
    %c0_i32 = arith.constant 0 : i32
    %c0_i32_0 = arith.constant 0 : i32
    %c0_i32_1 = arith.constant 0 : i32
    return %c0_i32, %c0_i32_0 : i32, i32
  }
  func.func @transform_6(%arg0: i32, %arg1: i32) -> (i32, i32) {
    %c0_i32 = arith.constant 0 : i32
    %c0_i32_0 = arith.constant 0 : i32
    %c0_i32_1 = arith.constant 0 : i32
    return %c0_i32, %c0_i32_0 : i32, i32
  }
  func.func @transform_7(%arg0: i32, %arg1: i32) -> (i32, i32, i32) {
    %c0_i32 = arith.constant 0 : i32
    %c0_i32_0 = arith.constant 0 : i32
    %c0_i32_1 = arith.constant 0 : i32
    return %arg0, %c0_i32, %c0_i32_0 : i32, i32, i32
  }
  func.func @transform_8(%arg0: i32, %arg1: i32) -> (i32, i32, i32) {
    %c0_i32 = arith.constant 0 : i32
    %c0_i32_0 = arith.constant 0 : i32
    %c0_i32_1 = arith.constant 0 : i32
    return %arg0, %c0_i32, %c0_i32_0 : i32, i32, i32
  }
  func.func @transform_9(%arg0: i32, %arg1: i32) -> (i32, i32, i32) {
    %c0_i32 = arith.constant 0 : i32
    %c0_i32_0 = arith.constant 0 : i32
    %c0_i32_1 = arith.constant 0 : i32
    return %arg0, %c0_i32, %c0_i32_0 : i32, i32, i32
  }
}

</mosaic_0001>

<llo_original>
// kernel: dann_fused_forward.1
$region0: #{dann_fused_forward.1}
  #allocation0 [shape = 'u32[]', space=smem, size = 0x4, offset = 0x4, fixed_abs, tag = 'smem constant byte address 0x4 - core index']
  #allocation1 [shape = 'u32[144,128]{1,0:T(1,128)}', space=vmem, size = 0x12000, scoped, tag = 'internal scratch']
  #allocation2 [shape = 'f32[1,128]{1,0:T(1,128)}', space=vmem, size = 0x200, scoped, tag = 'scratch operand']
  %s0 = inlined_call_operand.vmem [shape: bf16[2,256,36], index: 0, kind: input, shape index: {}]
  %s1 = inlined_call_operand.vmem [shape: bf16[36,128], index: 1, kind: input, shape index: {}]
  %s2 = inlined_call_operand.vmem [shape: f32[1,128], index: 2, kind: input, shape index: {}]
  %s3 = inlined_call_operand.vmem [shape: bf16[128,640], index: 3, kind: input, shape index: {}]
  %s4 = inlined_call_operand.vmem [shape: f32[1,640], index: 4, kind: input, shape index: {}]
  %s5 = inlined_call_operand.vmem [shape: bf16[512,128], index: 5, kind: input, shape index: {}]
  %s6 = inlined_call_operand.vmem [shape: f32[1,128], index: 6, kind: input, shape index: {}]
  %s7 = inlined_call_operand.hbm [shape: f32[2,1,128], index: 7, kind: output, shape index: {0}]
  %s8 = inlined_call_operand.vmem [shape: f32[2,1,128], index: 8, kind: output, shape index: {1}]
  %s9 = inlined_call_operand.hbm [shape: f32[2,1,128], index: 9, kind: output, shape index: {2}]
  %10 = xla_tuple %s7, %s8, %s9
  %s11 = sld [smem:[#allocation0]]
  $region85: #{dann_fused_forward.1} parent=0
    _
  %s13 = ssub.s32 1, %s11
  %s14 = scalar_select 0, %s13, %s11
  $region1: #{dann_fused_forward.1} parent=0
    #allocation3 [shape = 'u8[1024]{0}', space=vmem, size = 0x400, scoped, tag = 'output window, operand 0']
    #allocation4 [shape = 's32[2]{0}', space=sflag, size = 0x8, scoped, tag = 'scoped memory for dann_fused_forward.1']
    #allocation5 [shape = 'u8[1024]{0}', space=vmem, size = 0x400, scoped, tag = 'output window, operand 2']
    #allocation6 [shape = 's32[2]{0}', space=sflag, size = 0x8, scoped, tag = 'scoped memory for dann_fused_forward.1']
    %15 = vsyncpa [#allocation4], 0
    %s16 = scalar_lea.sflag [#allocation4], 1
    %17 = vsyncpa %s16, 0
    %18 = vsyncpa [#allocation6], 0
    %s19 = scalar_lea.sflag [#allocation6], 1
    %20 = vsyncpa %s19, 0
    loop: start=0, step=1, limit=4
    $region2: #{dann_fused_forward.1} parent=1 // loop_pre_header
      _
    $region3: #{dann_fused_forward.1} parent=1 // loop_header
      %s22 = sphi 0, %s26
      %p23 = scmp.ge.s32.totalorder %s22, 4
      %s29 = sphi 0, %s41
      %s30 = sphi 0, %s37
      %s31 = sphi 0, %s29
      %s32 = sphi 0, %s30
      %s33 = sphi 0, %s31
      %s34 = sphi 0, %s32
      %s46 = sphi 0, %s48
      %s49 = sphi 0, %s46
      %s50 = sphi 0, %s49
      %s66 = sphi 0, %s50
      %s70 = sphi 0, %s70
      %s72 = sphi 0, %s70
      %s73 = sphi 0, %s72
      %s87 = sphi 0, %s73
      %s91 = sphi 0, %s91
      %s93 = sphi 0, %s91
      %s94 = sphi 0, %s93
      %s108 = sphi 0, %s94
      %s112 = sphi 0, %s112
      %s114 = sphi 0, %s112
      %s115 = sphi 0, %s114
      %s129 = sphi 0, %s115
      %s133 = sphi 0, %s133
      %s135 = sphi 0, %s133
      %s136 = sphi 0, %s135
      %s150 = sphi 0, %s136
      %s154 = sphi 0, %s154
      %s156 = sphi 0, %s154
      %s157 = sphi 0, %s156
      %s171 = sphi 0, %s157
      %s175 = sphi 0, %s175
      %s177 = sphi 0, %s175
      %s178 = sphi 0, %s177
      %s192 = sphi 0, %s178
      %s198 = sphi 0, %s200
      %s201 = sphi 0, %s198
      %s202 = sphi 0, %s201
      %s218 = sphi 0, %s202
      %s224 = sphi 0, %s226
      %s227 = sphi 0, %s224
      %s228 = sphi 0, %s227
      %s244 = sphi 0, %s228
      %s250 = sphi 0, %s252
      %s253 = sphi 0, %s250
      %s254 = sphi 0, %s253
      %s270 = sphi 0, %s254
    $region4: #{dann_fused_forward.1} parent=1 // loop_header_branch
      %25 = sbr.rel (%p23) target = $region8
    $region5: #{dann_fused_forward.1} parent=1 // loop_body
      %s27 = ssub.s32 %s22, 1
      %s28 = ssub.s32 %s22, 2
      %s35 = sadd.s32 1, %s30
      %p36 = scmp.ge.s32.totalorder %s35, 1
      %s37 = scalar_select %p36, 0, %s35
      %s38 = sadd.s32 1, %s29
      %s39 = scalar_select %p36, %s38, %s29
      %p40 = scmp.ge.s32.totalorder %s39, 2
      %s41 = scalar_select %p40, 0, %s39
      %s42 = ssub.s32 %s29, %s41
      %s43 = ssub.s32 %s30, %s37
      %s44 = sor.u32 %s42, %s43
      %p45 = scmp.eq.s32.totalorder %s44, 0
      %s47 = sadd.s32 %s46, 1
      %s48 = scalar_select %p45, %s46, %s47
      %p51 = pneg %p45
      %p52 = scmp.eq.s32.totalorder %s22, 1
      %p53 = por %p51, %p52
      %p54 = scmp.ne.s32.totalorder %s46, %s49
      %p55 = scmp.eq.s32.totalorder %s22, 0
      %p56 = por %p54, %p55
      %p57 = scmp.ne.s32.totalorder %s46, %s49
      %p58 = scmp.eq.s32.totalorder %s27, 1
      %p59 = por %p57, %p58
      %p60 = scmp.ne.s32.totalorder %s49, %s50
      %p61 = scmp.eq.s32.totalorder %s27, 0
      %p62 = por %p60, %p61
      %p63 = scmp.ne.s32.totalorder %s49, %s50
      %p64 = scmp.eq.s32.totalorder %s28, 1
      %p65 = por %p63, %p64
      %p67 = scmp.ne.s32.totalorder %s50, %s66
      %p68 = scmp.eq.s32.totalorder %s28, 0
      %p69 = por %p67, %p68
      %s71 = sadd.s32 %s70, 1
      %p74 = scmp.eq.s32.totalorder %s22, 1
      %p75 = scmp.ne.s32.totalorder %s70, %s72
      %p76 = scmp.eq.s32.totalorder %s22, 0
      %p77 = por %p75, %p76
      %p78 = scmp.ne.s32.totalorder %s70, %s72
      %p79 = scmp.eq.s32.totalorder %s27, 1
      %p80 = por %p78, %p79
      %p81 = scmp.ne.s32.totalorder %s72, %s73
      %p82 = scmp.eq.s32.totalorder %s27, 0
      %p83 = por %p81, %p82
      %p84 = scmp.ne.s32.totalorder %s72, %s73
      %p85 = scmp.eq.s32.totalorder %s28, 1
      %p86 = por %p84, %p85
      %p88 = scmp.ne.s32.totalorder %s73, %s87
      %p89 = scmp.eq.s32.totalorder %s28, 0
      %p90 = por %p88, %p89
      %s92 = sadd.s32 %s91, 1
      %p95 = scmp.eq.s32.totalorder %s22, 1
      %p96 = scmp.ne.s32.totalorder %s91, %s93
      %p97 = scmp.eq.s32.totalorder %s22, 0
      %p98 = por %p96, %p97
      %p99 = scmp.ne.s32.totalorder %s91, %s93
      %p100 = scmp.eq.s32.totalorder %s27, 1
      %p101 = por %p99, %p100
      %p102 = scmp.ne.s32.totalorder %s93, %s94
      %p103 = scmp.eq.s32.totalorder %s27, 0
      %p104 = por %p102, %p103
      %p105 = scmp.ne.s32.totalorder %s93, %s94
      %p106 = scmp.eq.s32.totalorder %s28, 1
      %p107 = por %p105, %p106
      %p109 = scmp.ne.s32.totalorder %s94, %s108
      %p110 = scmp.eq.s32.totalorder %s28, 0
      %p111 = por %p109, %p110
      %s113 = sadd.s32 %s112, 1
      %p116 = scmp.eq.s32.totalorder %s22, 1
      %p117 = scmp.ne.s32.totalorder %s112, %s114
      %p118 = scmp.eq.s32.totalorder %s22, 0
      %p119 = por %p117, %p118
      %p120 = scmp.ne.s32.totalorder %s112, %s114
      %p121 = scmp.eq.s32.totalorder %s27, 1
      %p122 = por %p120, %p121
      %p123 = scmp.ne.s32.totalorder %s114, %s115
      %p124 = scmp.eq.s32.totalorder %s27, 0
      %p125 = por %p123, %p124
      %p126 = scmp.ne.s32.totalorder %s114, %s115
      %p127 = scmp.eq.s32.totalorder %s28, 1
      %p128 = por %p126, %p127
      %p130 = scmp.ne.s32.totalorder %s115, %s129
      %p131 = scmp.eq.s32.totalorder %s28, 0
      %p132 = por %p130, %p131
      %s134 = sadd.s32 %s133, 1
      %p137 = scmp.eq.s32.totalorder %s22, 1
      %p138 = scmp.ne.s32.totalorder %s133, %s135
      %p139 = scmp.eq.s32.totalorder %s22, 0
      %p140 = por %p138, %p139
      %p141 = scmp.ne.s32.totalorder %s133, %s135
      %p142 = scmp.eq.s32.totalorder %s27, 1
      %p143 = por %p141, %p142
      %p144 = scmp.ne.s32.totalorder %s135, %s136
      %p145 = scmp.eq.s32.totalorder %s27, 0
      %p146 = por %p144, %p145
      %p147 = scmp.ne.s32.totalorder %s135, %s136
      %p148 = scmp.eq.s32.totalorder %s28, 1
      %p149 = por %p147, %p148
      %p151 = scmp.ne.s32.totalorder %s136, %s150
      %p152 = scmp.eq.s32.totalorder %s28, 0
      %p153 = por %p151, %p152
      %s155 = sadd.s32 %s154, 1
      %p158 = scmp.eq.s32.totalorder %s22, 1
      %p159 = scmp.ne.s32.totalorder %s154, %s156
      %p160 = scmp.eq.s32.totalorder %s22, 0
      %p161 = por %p159, %p160
      %p162 = scmp.ne.s32.totalorder %s154, %s156
      %p163 = scmp.eq.s32.totalorder %s27, 1
      %p164 = por %p162, %p163
      %p165 = scmp.ne.s32.totalorder %s156, %s157
      %p166 = scmp.eq.s32.totalorder %s27, 0
      %p167 = por %p165, %p166
      %p168 = scmp.ne.s32.totalorder %s156, %s157
      %p169 = scmp.eq.s32.totalorder %s28, 1
      %p170 = por %p168, %p169
      %p172 = scmp.ne.s32.totalorder %s157, %s171
      %p173 = scmp.eq.s32.totalorder %s28, 0
      %p174 = por %p172, %p173
      %s176 = sadd.s32 %s175, 1
      %p179 = scmp.eq.s32.totalorder %s22, 1
      %p180 = scmp.ne.s32.totalorder %s175, %s177
      %p181 = scmp.eq.s32.totalorder %s22, 0
      %p182 = por %p180, %p181
      %p183 = scmp.ne.s32.totalorder %s175, %s177
      %p184 = scmp.eq.s32.totalorder %s27, 1
      %p185 = por %p183, %p184
      %p186 = scmp.ne.s32.totalorder %s177, %s178
      %p187 = scmp.eq.s32.totalorder %s27, 0
      %p188 = por %p186, %p187
      %p189 = scmp.ne.s32.totalorder %s177, %s178
      %p190 = scmp.eq.s32.totalorder %s28, 1
      %p191 = por %p189, %p190
      %p193 = scmp.ne.s32.totalorder %s178, %s192
      %p194 = scmp.eq.s32.totalorder %s28, 0
      %p195 = por %p193, %p194
      %s196 = ssub.s32 %s29, %s41
      %p197 = scmp.eq.s32.totalorder %s196, 0
      %s199 = sadd.s32 %s198, 1
      %s200 = scalar_select %p197, %s198, %s199
      %p203 = pneg %p197
      %p204 = scmp.eq.s32.totalorder %s22, 1
      %p205 = por %p203, %p204
      %p206 = scmp.ne.s32.totalorder %s198, %s201
      %p207 = scmp.eq.s32.totalorder %s22, 0
      %p208 = por %p206, %p207
      %p209 = scmp.ne.s32.totalorder %s198, %s201
      %p210 = scmp.eq.s32.totalorder %s27, 1
      %p211 = por %p209, %p210
      %p212 = scmp.ne.s32.totalorder %s201, %s202
      %p213 = scmp.eq.s32.totalorder %s27, 0
      %p214 = por %p212, %p213
      %p215 = scmp.ne.s32.totalorder %s201, %s202
      %p216 = scmp.eq.s32.totalorder %s28, 1
      %p217 = por %p215, %p216
      %p219 = scmp.ne.s32.totalorder %s202, %s218
      %p220 = scmp.eq.s32.totalorder %s28, 0
      %p221 = por %p219, %p220
      %s222 = ssub.s32 %s29, %s41
      %p223 = scmp.eq.s32.totalorder %s222, 0
      %s225 = sadd.s32 %s224, 1
      %s226 = scalar_select %p223, %s224, %s225
      %p229 = pneg %p223
      %p230 = scmp.eq.s32.totalorder %s22, 1
      %p231 = por %p229, %p230
      %p232 = scmp.ne.s32.totalorder %s224, %s227
      %p233 = scmp.eq.s32.totalorder %s22, 0
      %p234 = por %p232, %p233
      %p235 = scmp.ne.s32.totalorder %s224, %s227
      %p236 = scmp.eq.s32.totalorder %s27, 1
      %p237 = por %p235, %p236
      %p238 = scmp.ne.s32.totalorder %s227, %s228
      %p239 = scmp.eq.s32.totalorder %s27, 0
      %p240 = por %p238, %p239
      %p241 = scmp.ne.s32.totalorder %s227, %s228
      %p242 = scmp.eq.s32.totalorder %s28, 1
      %p243 = por %p241, %p242
      %p245 = scmp.ne.s32.totalorder %s228, %s244
      %p246 = scmp.eq.s32.totalorder %s28, 0
      %p247 = por %p245, %p246
      %s248 = ssub.s32 %s29, %s41
      %p249 = scmp.eq.s32.totalorder %s248, 0
      %s251 = sadd.s32 %s250, 1
      %s252 = scalar_select %p249, %s250, %s251
      %p255 = pneg %p249
      %p256 = scmp.eq.s32.totalorder %s22, 1
      %p257 = por %p255, %p256
      %p258 = scmp.ne.s32.totalorder %s250, %s253
      %p259 = scmp.eq.s32.totalorder %s22, 0
      %p260 = por %p258, %p259
      %p261 = scmp.ne.s32.totalorder %s250, %s253
      %p262 = scmp.eq.s32.totalorder %s27, 1
      %p263 = por %p261, %p262
      %p264 = scmp.ne.s32.totalorder %s253, %s254
      %p265 = scmp.eq.s32.totalorder %s27, 0
      %p266 = por %p264, %p265
      %p267 = scmp.ne.s32.totalorder %s253, %s254
      %p268 = scmp.eq.s32.totalorder %s28, 1
      %p269 = por %p267, %p268
      %p271 = scmp.ne.s32.totalorder %s254, %s270
      %p272 = scmp.eq.s32.totalorder %s28, 0
      %p273 = por %p271, %p272
      %p274 = scmp.le.s32.totalorder 1, %s22
      %p275 = scmp.lt.s32.totalorder %s22, 3
      %p276 = pnand %p274, %p275
      %p277 = pneg %p276
      // Predicated region
      $region9: #{dann_fused_forward.1} parent=5 // pred_check
        _
      $region10: #{dann_fused_forward.1} parent=5 // pred_check_branch
        %279 = sbr.rel (%p276) target = $region12
      $region11: #{dann_fused_forward.1} parent=5 // pred_region
        %s280 = ssub.s32 %s22, 1
        // Predicated region
        $region13: #{dann_fused_forward.1} parent=11 // pred_check
          %p281 = pneg %p83
        $region14: #{dann_fused_forward.1} parent=11 // pred_check_branch
          %283 = sbr.rel (%p281) target = $region16
        $region15: #{dann_fused_forward.1} parent=11 // pred_region
          _
        $region16: #{dann_fused_forward.1} parent=11 // pred_fallthru
          _
        // Predicated region
        $region17: #{dann_fused_forward.1} parent=11 // pred_check
          %p284 = pneg %p104
        $region18: #{dann_fused_forward.1} parent=11 // pred_check_branch
          %286 = sbr.rel (%p284) target = $region20
        $region19: #{dann_fused_forward.1} parent=11 // pred_region
          _
        $region20: #{dann_fused_forward.1} parent=11 // pred_fallthru
          _
        // Predicated region
        $region21: #{dann_fused_forward.1} parent=11 // pred_check
          %p287 = pneg %p125
        $region22: #{dann_fused_forward.1} parent=11 // pred_check_branch
          %289 = sbr.rel (%p287) target = $region24
        $region23: #{dann_fused_forward.1} parent=11 // pred_region
          _
        $region24: #{dann_fused_forward.1} parent=11 // pred_fallthru
          _
        // Predicated region
        $region25: #{dann_fused_forward.1} parent=11 // pred_check
          %p290 = pneg %p146
        $region26: #{dann_fused_forward.1} parent=11 // pred_check_branch
          %292 = sbr.rel (%p290) target = $region28
        $region27: #{dann_fused_forward.1} parent=11 // pred_region
          _
        $region28: #{dann_fused_forward.1} parent=11 // pred_fallthru
          _
        // Predicated region
        $region29: #{dann_fused_forward.1} parent=11 // pred_check
          %p293 = pneg %p167
        $region30: #{dann_fused_forward.1} parent=11 // pred_check_branch
          %295 = sbr.rel (%p293) target = $region32
        $region31: #{dann_fused_forward.1} parent=11 // pred_region
          _
        $region32: #{dann_fused_forward.1} parent=11 // pred_fallthru
          _
        // Predicated region
        $region33: #{dann_fused_forward.1} parent=11 // pred_check
          %p296 = pneg %p188
        $region34: #{dann_fused_forward.1} parent=11 // pred_check_branch
          %298 = sbr.rel (%p296) target = $region36
        $region35: #{dann_fused_forward.1} parent=11 // pred_region
          _
        $region36: #{dann_fused_forward.1} parent=11 // pred_fallthru
          _
      $region12: #{dann_fused_forward.1} parent=5 // pred_fallthru
        _
      %p299 = scmp.lt.s32.totalorder %s22, 2
      // Predicated region
      $region37: #{dann_fused_forward.1} parent=5 // pred_check
        %p300 = pneg %p299
      $region38: #{dann_fused_forward.1} parent=5 // pred_check_branch
        %302 = sbr.rel (%p300) target = $region40
      $region39: #{dann_fused_forward.1} parent=5 // pred_region
        // Predicated region
        $region41: #{dann_fused_forward.1} parent=39 // pred_check
          %p303 = pneg %p56
        $region42: #{dann_fused_forward.1} parent=39 // pred_check_branch
          %305 = sbr.rel (%p303) target = $region44
        $region43: #{dann_fused_forward.1} parent=39 // pred_region
          %s306 = smul.u32 32, %s30
          %p307 = scmp.lt.s32.totalorder %s29, 1
          %s308 = scalar_select %p307, %s29, 1
          %p309 = scmp.lt.s32.totalorder %s306, 31
          %s310 = scalar_select %p309, %s306, 31
          %s311 = smul.addr %s308, 32
          %s312 = sadd.s32 %s310, %s311
          %s313 = smul.addr %s312, 4
          %s314 = scalar_lea.vmem %s0, %s313
          %s315 = smul.u32 32, %s30
        $region44: #{dann_fused_forward.1} parent=39 // pred_fallthru
          _
      $region40: #{dann_fused_forward.1} parent=5 // pred_fallthru
        _
      %p316 = scmp.le.s32.totalorder 1, %s22
      %p317 = scmp.lt.s32.totalorder %s22, 3
      %p318 = pnand %p316, %p317
      %p319 = pneg %p318
      // Predicated region
      $region45: #{dann_fused_forward.1} parent=5 // pred_check
        _
      $region46: #{dann_fused_forward.1} parent=5 // pred_check_branch
        %321 = sbr.rel (%p318) target = $region48
      $region47: #{dann_fused_forward.1} parent=5 // pred_region
        %s322 = ssub.s32 %s22, 1
        %s323 = smul.u32 32, %s32
        %p324 = scmp.lt.s32.totalorder %s31, 1
        %s325 = scalar_select %p324, %s31, 1
        %p326 = scmp.lt.s32.totalorder %s323, 31
        %s327 = scalar_select %p326, %s323, 31
        %s328 = smul.addr %s325, 32
        %s329 = sadd.s32 %s327, %s328
        %s330 = smul.addr %s329, 4
        %s331 = scalar_lea.vmem %s0, %s330
        %p332 = pneg %p62
        %p333 = pneg %p59
        %p334 = pneg %p83
        %p335 = pneg %p80
        %p336 = pneg %p104
        %p337 = pneg %p101
        %p338 = pneg %p125
        %p339 = pneg %p122
        %p340 = pneg %p146
        %p341 = pneg %p143
        %p342 = pneg %p167
        %p343 = pneg %p164
        %p344 = pneg %p188
        %p345 = pneg %p185
        %p346 = pneg %p214
        %p347 = pneg %p211
        %s348 = sand.u32 %s201, 1
        %s349 = scalar_lea.sflag [#allocation4], %s348
        %s350 = sand.u32 %s201, 1
        %s351 = scalar_lea.vmem [#allocation3], %s350
        %p352 = pneg %p240
        %p353 = pneg %p237
        %p354 = scmp.lt.s32.totalorder %s31, 1
        %s355 = scalar_select %p354, %s31, 1
        %s356 = scalar_lea.vmem %s8, %s355
        %p357 = pneg %p266
        %p358 = pneg %p263
        %s359 = sand.u32 %s253, 1
        %s360 = scalar_lea.sflag [#allocation6], %s359
        %s361 = sand.u32 %s253, 1
        %s362 = scalar_lea.vmem [#allocation5], %s361
        %s363 = smul.u32 32, %s32
        %p364 = scmp.lt.s32.totalorder %s31, 1
        %s365 = scalar_select %p364, %s31, 1
        %p366 = scmp.lt.s32.totalorder %s363, 31
        %s367 = scalar_select %p366, %s363, 31
        %s368 = smul.addr %s365, 32
        %s369 = sadd.s32 %s367, %s368
        %s370 = smul.addr %s369, 4
        %s371 = scalar_lea.vmem %s0, %s370
        %s372 = smul.u32 32, %s32
        %p373 = scmp.lt.s32.totalorder %s31, 1
        %s374 = scalar_select %p373, %s31, 1
        %s375 = scalar_lea.vmem %s8, %s374
        %p377 = scmp.eq.s32.totalorder %s32, 0
        // Predicated region
        $region49: #{dann_fused_forward.1} parent=47 // pred_check
          %p378 = pneg %p377
        $region50: #{dann_fused_forward.1} parent=47 // pred_check_branch
          %380 = sbr.rel (%p378) target = $region52
        $region51: #{dann_fused_forward.1} parent=47 // pred_region
          %381 = vst [vmem:[#allocation2] sm:$0x1] 0.0
        $region52: #{dann_fused_forward.1} parent=47 // pred_fallthru
          _
        %v382 = vld [vmem:[%s371] sm:$0xf]
        %v383 = vld [vmem:[%s371 + $0x4] sm:$0xf]
        %v384 = vld [vmem:[%s371 + $0x8] sm:$0xf]
        %v385 = vld [vmem:[%s371 + $0xc] sm:$0xf]
        %v386 = vld [vmem:[%s371 + $0x10] sm:$0xf]
        %v387 = vld [vmem:[%s371 + $0x14] sm:$0xf]
        %v388 = vld [vmem:[%s371 + $0x18] sm:$0xf]
        %v389 = vld [vmem:[%s371 + $0x1c] sm:$0xf]
        %v390 = vld [vmem:[%s371 + $0x20] sm:$0xf]
        %v391 = vld [vmem:[%s371 + $0x24] sm:$0xf]
        %v392 = vld [vmem:[%s371 + $0x28] sm:$0xf]
        %v393 = vld [vmem:[%s371 + $0x2c] sm:$0xf]
        %v394 = vld [vmem:[%s371 + $0x30] sm:$0xf]
        %v395 = vld [vmem:[%s371 + $0x34] sm:$0xf]
        %v396 = vld [vmem:[%s371 + $0x38] sm:$0xf]
        %v397 = vld [vmem:[%s371 + $0x3c] sm:$0xf]
        %v398 = vld [vmem:[%s371 + $0x40] sm:$0xf]
        %v399 = vld [vmem:[%s371 + $0x44] sm:$0xf]
        %v400 = vld [vmem:[%s371 + $0x48] sm:$0xf]
        %v401 = vld [vmem:[%s371 + $0x4c] sm:$0xf]
        %v402 = vld [vmem:[%s371 + $0x50] sm:$0xf]
        %v403 = vld [vmem:[%s371 + $0x54] sm:$0xf]
        %v404 = vld [vmem:[%s371 + $0x58] sm:$0xf]
        %v405 = vld [vmem:[%s371 + $0x5c] sm:$0xf]
        %v406 = vld [vmem:[%s371 + $0x60] sm:$0xf]
        %v407 = vld [vmem:[%s371 + $0x64] sm:$0xf]
        %v408 = vld [vmem:[%s371 + $0x68] sm:$0xf]
        %v409 = vld [vmem:[%s371 + $0x6c] sm:$0xf]
        %v410 = vld [vmem:[%s371 + $0x70] sm:$0xf]
        %v411 = vld [vmem:[%s371 + $0x74] sm:$0xf]
        %v412 = vld [vmem:[%s371 + $0x78] sm:$0xf]
        %v413 = vld [vmem:[%s371 + $0x7c] sm:$0xf]
        %v414 = vld [vmem:[%s1] sm:$0xf]
        %v415 = vld [vmem:[%s1 + $0x4] sm:$0xf]
        %v416 = vld [vmem:[%s1 + $0x8] sm:$0xf]
        %v417 = vld [vmem:[%s1 + $0xc] sm:$0xf]
        %v418 = vld [vmem:[%s1 + $0x10] sm:$0x3]
        %v419 = vld [vmem:[%s2] sm:$0x1]
        %v421 = vlaneseq
        %v422 = vshrl.u32 %v421, 7
        %v423 = vsub.s32 0, %v422
        %v424 = vrot.slane %v419, %v423
        %v458 = vunpack.c.l.b16 %v382
        %v459 = vunpack.c.l.b16 %v383
        %v460 = vunpack.c.l.b16 %v384
        %v461 = vunpack.c.l.b16 %v385
        %v462 = vunpack.c.l.b16 %v386
        %v463 = vunpack.c.l.b16 %v387
        %v464 = vunpack.c.l.b16 %v388
        %v465 = vunpack.c.l.b16 %v389
        %v466 = vunpack.c.l.b16 %v390
        %v467 = vunpack.c.l.b16 %v391
        %v468 = vunpack.c.l.b16 %v392
        %v469 = vunpack.c.l.b16 %v393
        %v470 = vunpack.c.l.b16 %v394
        %v471 = vunpack.c.l.b16 %v395
        %v472 = vunpack.c.l.b16 %v396
        %v473 = vunpack.c.l.b16 %v397
        %v474 = vunpack.c.l.b16 %v398
        %v475 = vunpack.c.l.b16 %v399
        %v476 = vunpack.c.l.b16 %v400
        %v477 = vunpack.c.l.b16 %v401
        %v478 = vunpack.c.l.b16 %v402
        %v479 = vunpack.c.l.b16 %v403
        %v480 = vunpack.c.l.b16 %v404
        %v481 = vunpack.c.l.b16 %v405
        %v482 = vunpack.c.l.b16 %v406
        %v483 = vunpack.c.l.b16 %v407
        %v484 = vunpack.c.l.b16 %v408
        %v485 = vunpack.c.l.b16 %v409
        %v486 = vunpack.c.l.b16 %v410
        %v487 = vunpack.c.l.b16 %v411
        %v488 = vunpack.c.l.b16 %v412
        %v489 = vunpack.c.l.b16 %v413
        %v490 = vpack.c.b16 %v459, %v458
        %v491 = vpack.c.b16 %v461, %v460
        %v492 = vpack.c.b16 %v463, %v462
        %v493 = vpack.c.b16 %v465, %v464
        %v494 = vpack.c.b16 %v467, %v466
        %v495 = vpack.c.b16 %v469, %v468
        %v496 = vpack.c.b16 %v471, %v470
        %v497 = vpack.c.b16 %v473, %v472
        %v498 = vpack.c.b16 %v475, %v474
        %v499 = vpack.c.b16 %v477, %v476
        %v500 = vpack.c.b16 %v479, %v478
        %v501 = vpack.c.b16 %v481, %v480
        %v502 = vpack.c.b16 %v483, %v482
        %v503 = vpack.c.b16 %v485, %v484
        %v504 = vpack.c.b16 %v487, %v486
        %v505 = vpack.c.b16 %v489, %v488
        %v511 = vunpack.c.l.b16 %v414
        %v512 = vunpack.c.l.b16 %v415
        %v513 = vunpack.c.l.b16 %v416
        %v514 = vunpack.c.l.b16 %v417
        %v515 = vunpack.c.l.b16 %v418
        %v516 = vpack.c.b16 %v512, %v511
        %v517 = vpack.c.b16 %v514, %v513
        %v518 = vpack.c.b16 %v515, %v515
        %vm521 = vcmask 293888
        %v523 = vsel %vm521, %v490, 0
        %v526 = vsel %vm521, %v491, 0
        %v529 = vsel %vm521, %v492, 0
        %v532 = vsel %vm521, %v493, 0
        %v535 = vsel %vm521, %v494, 0
        %v538 = vsel %vm521, %v495, 0
        %v541 = vsel %vm521, %v496, 0
        %v544 = vsel %vm521, %v497, 0
        %v547 = vsel %vm521, %v498, 0
        %v550 = vsel %vm521, %v499, 0
        %v553 = vsel %vm521, %v500, 0
        %v556 = vsel %vm521, %v501, 0
        %v559 = vsel %vm521, %v502, 0
        %v562 = vsel %vm521, %v503, 0
        %v565 = vsel %vm521, %v504, 0
        %v568 = vsel %vm521, %v505, 0
        %vm570 = vcmask 1041408
        %v572 = vsel %vm570, %v518, 0
        %574 = vmatprep.subr.bf16.mxu0 0
        %575 = vmatpush1.bf16.msra.mxu0 %v516
        %576 = vmatprep.subr.bf16.mxu0 0
        %577 = vmatpush1.bf16.msra.mxu0 %v517
        %578 = vmatprep.subr.bf16.mxu0 0
        %579 = vmatpush1.bf16.msra.mxu0 %v572
        %580 = vmatprep.subr.bf16.mxu0 0
        %581 = vmatpush1.bf16.msra.mxu0 0
        %582 = vmatprep.subr.bf16.mxu0 0
        %583 = vmatpush1.bf16.msra.mxu0 0
        %584 = vmatprep.subr.bf16.mxu0 0
        %585 = vmatpush1.bf16.msra.mxu0 0
        %586 = vmatprep.subr.bf16.mxu0 0
        %587 = vmatpush1.bf16.msra.mxu0 0
        %588 = vmatprep.subr.bf16.mxu0 0
        %589 = vmatpush1.bf16.msra.mxu0 0
        %590 = vmatprep.subr.bf16.mxu0 0
        %591 = vmatpush1.bf16.msra.mxu0 0
        %592 = vmatprep.subr.bf16.mxu0 0
        %593 = vmatpush1.bf16.msra.mxu0 0
        %594 = vmatprep.subr.bf16.mxu0 0
        %595 = vmatpush1.bf16.msra.mxu0 0
        %596 = vmatprep.subr.bf16.mxu0 0
        %597 = vmatpush1.bf16.msra.mxu0 0
        %598 = vmatprep.subr.bf16.mxu0 0
        %599 = vmatpush1.bf16.msra.mxu0 0
        %600 = vmatprep.subr.bf16.mxu0 0
        %601 = vmatpush1.bf16.msra.mxu0 0
        %602 = vmatprep.subr.bf16.mxu0 0
        %603 = vmatpush1.bf16.msra.mxu0 0
        %604 = vmatprep.subr.bf16.mxu0 0
        %605 = vmatpush1.bf16.msra.mxu0 0
        %606 = vmatprep.mubr.bf16.mxu0 0
        %607 = vmatmul.mubr.bf16.gmra.mrb[0].mxu0 %v523
        %v608 = vpop.f32.mrb[0].mxu0
        %v609 = vadd.f32 %v424, %v608
        %v610 = vpop.f32.mrb[0].mxu0
        %v611 = vpop.f32.mrb[0].mxu0
        %v612 = vadd.f32 %v424, %v611
        %v613 = vpop.f32.mrb[0].mxu0
        %614 = vmatprep.mubr.bf16.mxu0 0
        %615 = vmatmul.mubr.bf16.gmra.mrb[0].mxu0 %v526
        %v616 = vpop.f32.mrb[0].mxu0
        %v617 = vadd.f32 %v424, %v616
        %v618 = vpop.f32.mrb[0].mxu0
        %v619 = vpop.f32.mrb[0].mxu0
        %v620 = vadd.f32 %v424, %v619
        %v621 = vpop.f32.mrb[0].mxu0
        %622 = vmatprep.mubr.bf16.mxu0 0
        %623 = vmatmul.mubr.bf16.gmra.mrb[0].mxu0 %v529
        %v624 = vpop.f32.mrb[0].mxu0
        %v625 = vadd.f32 %v424, %v624
        %v626 = vpop.f32.mrb[0].mxu0
        %v627 = vpop.f32.mrb[0].mxu0
        %v628 = vadd.f32 %v424, %v627
        %v629 = vpop.f32.mrb[0].mxu0
        %630 = vmatprep.mubr.bf16.mxu0 0
        %631 = vmatmul.mubr.bf16.gmra.mrb[0].mxu0 %v532
        %v632 = vpop.f32.mrb[0].mxu0
        %v633 = vadd.f32 %v424, %v632
        %v634 = vpop.f32.mrb[0].mxu0
        %v635 = vpop.f32.mrb[0].mxu0
        %v636 = vadd.f32 %v424, %v635
        %v637 = vpop.f32.mrb[0].mxu0
        %638 = vmatprep.mubr.bf16.mxu0 0
        %639 = vmatmul.mubr.bf16.gmra.mrb[0].mxu0 %v535
        %v640 = vpop.f32.mrb[0].mxu0
        %v641 = vadd.f32 %v424, %v640
        %v642 = vpop.f32.mrb[0].mxu0
        %v643 = vpop.f32.mrb[0].mxu0
        %v644 = vadd.f32 %v424, %v643
        %v645 = vpop.f32.mrb[0].mxu0
        %646 = vmatprep.mubr.bf16.mxu0 0
        %647 = vmatmul.mubr.bf16.gmra.mrb[0].mxu0 %v538
        %v648 = vpop.f32.mrb[0].mxu0
        %v649 = vadd.f32 %v424, %v648
        %v650 = vpop.f32.mrb[0].mxu0
        %v651 = vpop.f32.mrb[0].mxu0
        %v652 = vadd.f32 %v424, %v651
        %v653 = vpop.f32.mrb[0].mxu0
        %654 = vmatprep.mubr.bf16.mxu0 0
        %655 = vmatmul.mubr.bf16.gmra.mrb[0].mxu0 %v541
        %v656 = vpop.f32.mrb[0].mxu0
        %v657 = vadd.f32 %v424, %v656
        %v658 = vpop.f32.mrb[0].mxu0
        %v659 = vpop.f32.mrb[0].mxu0
        %v660 = vadd.f32 %v424, %v659
        %v661 = vpop.f32.mrb[0].mxu0
        %662 = vmatprep.mubr.bf16.mxu0 0
        %663 = vmatmul.mubr.bf16.gmra.mrb[0].mxu0 %v544
        %v664 = vpop.f32.mrb[0].mxu0
        %v665 = vadd.f32 %v424, %v664
        %v666 = vpop.f32.mrb[0].mxu0
        %v667 = vpop.f32.mrb[0].mxu0
        %v668 = vadd.f32 %v424, %v667
        %v669 = vpop.f32.mrb[0].mxu0
        %670 = vmatprep.mubr.bf16.mxu0 0
        %671 = vmatmul.mubr.bf16.gmra.mrb[0].mxu0 %v547
        %v672 = vpop.f32.mrb[0].mxu0
        %v673 = vadd.f32 %v424, %v672
        %v674 = vpop.f32.mrb[0].mxu0
        %v675 = vpop.f32.mrb[0].mxu0
        %v676 = vadd.f32 %v424, %v675
        %v677 = vpop.f32.mrb[0].mxu0
        %678 = vmatprep.mubr.bf16.mxu0 0
        %679 = vmatmul.mubr.bf16.gmra.mrb[0].mxu0 %v550
        %v680 = vpop.f32.mrb[0].mxu0
        %v681 = vadd.f32 %v424, %v680
        %v682 = vpop.f32.mrb[0].mxu0
        %v683 = vpop.f32.mrb[0].mxu0
        %v684 = vadd.f32 %v424, %v683
        %v685 = vpop.f32.mrb[0].mxu0
        %686 = vmatprep.mubr.bf16.mxu0 0
        %687 = vmatmul.mubr.bf16.gmra.mrb[0].mxu0 %v553
        %v688 = vpop.f32.mrb[0].mxu0
        %v689 = vadd.f32 %v424, %v688
        %v690 = vpop.f32.mrb[0].mxu0
        %v691 = vpop.f32.mrb[0].mxu0
        %v692 = vadd.f32 %v424, %v691
        %v693 = vpop.f32.mrb[0].mxu0
        %694 = vmatprep.mubr.bf16.mxu0 0
        %695 = vmatmul.mubr.bf16.gmra.mrb[0].mxu0 %v556
        %v696 = vpop.f32.mrb[0].mxu0
        %v697 = vadd.f32 %v424, %v696
        %v698 = vpop.f32.mrb[0].mxu0
        %v699 = vpop.f32.mrb[0].mxu0
        %v700 = vadd.f32 %v424, %v699
        %v701 = vpop.f32.mrb[0].mxu0
        %702 = vmatprep.mubr.bf16.mxu0 0
        %703 = vmatmul.mubr.bf16.gmra.mrb[0].mxu0 %v559
        %v704 = vpop.f32.mrb[0].mxu0
        %v705 = vadd.f32 %v424, %v704
        %v706 = vpop.f32.mrb[0].mxu0
        %v707 = vpop.f32.mrb[0].mxu0
        %v708 = vadd.f32 %v424, %v707
        %v709 = vpop.f32.mrb[0].mxu0
        %710 = vmatprep.mubr.bf16.mxu0 0
        %711 = vmatmul.mubr.bf16.gmra.mrb[0].mxu0 %v562
        %v712 = vpop.f32.mrb[0].mxu0
        %v713 = vadd.f32 %v424, %v712
        %v714 = vpop.f32.mrb[0].mxu0
        %v715 = vpop.f32.mrb[0].mxu0
        %v716 = vadd.f32 %v424, %v715
        %v717 = vpop.f32.mrb[0].mxu0
        %718 = vmatprep.mubr.bf16.mxu0 0
        %719 = vmatmul.mubr.bf16.gmra.mrb[0].mxu0 %v565
        %v720 = vpop.f32.mrb[0].mxu0
        %v721 = vadd.f32 %v424, %v720
        %v722 = vpop.f32.mrb[0].mxu0
        %v723 = vpop.f32.mrb[0].mxu0
        %v724 = vadd.f32 %v424, %v723
        %v725 = vpop.f32.mrb[0].mxu0
        %726 = vmatprep.mubr.bf16.mxu0 0
        %727 = vmatmul.mubr.bf16.gmra.mrb[0].mxu0 %v568
        %v728 = vpop.f32.mrb[0].mxu0
        %v729 = vadd.f32 %v424, %v728
        %v730 = vpop.f32.mrb[0].mxu0
        %v731 = vpop.f32.mrb[0].mxu0
        %v732 = vadd.f32 %v424, %v731
        %v733 = vpop.f32.mrb[0].mxu0
        %734 = vdwg.mxu0
        %v735 = vmax.f32 %v609, 0.0
        %v736 = vmax.f32 %v612, 0.0
        %v737 = vmax.f32 %v617, 0.0
        %v738 = vmax.f32 %v620, 0.0
        %v739 = vmax.f32 %v625, 0.0
        %v740 = vmax.f32 %v628, 0.0
        %v741 = vmax.f32 %v633, 0.0
        %v742 = vmax.f32 %v636, 0.0
        %v743 = vmax.f32 %v641, 0.0
        %v744 = vmax.f32 %v644, 0.0
        %v745 = vmax.f32 %v649, 0.0
        %v746 = vmax.f32 %v652, 0.0
        %v747 = vmax.f32 %v657, 0.0
        %v748 = vmax.f32 %v660, 0.0
        %v749 = vmax.f32 %v665, 0.0
        %v750 = vmax.f32 %v668, 0.0
        %v751 = vmax.f32 %v673, 0.0
        %v752 = vmax.f32 %v676, 0.0
        %v753 = vmax.f32 %v681, 0.0
        %v754 = vmax.f32 %v684, 0.0
        %v755 = vmax.f32 %v689, 0.0
        %v756 = vmax.f32 %v692, 0.0
        %v757 = vmax.f32 %v697, 0.0
        %v758 = vmax.f32 %v700, 0.0
        %v759 = vmax.f32 %v705, 0.0
        %v760 = vmax.f32 %v708, 0.0
        %v761 = vmax.f32 %v713, 0.0
        %v762 = vmax.f32 %v716, 0.0
        %v763 = vmax.f32 %v721, 0.0
        %v764 = vmax.f32 %v724, 0.0
        %v765 = vmax.f32 %v729, 0.0
        %v766 = vmax.f32 %v732, 0.0
        %v767 = vld [vmem:[#allocation2] sm:$0x1]
        %v768 = vadd.f32 %v735, %v736
        %v769 = vadd.f32 %v768, %v737
        %v770 = vadd.f32 %v769, %v738
        %v771 = vadd.f32 %v770, %v739
        %v772 = vadd.f32 %v771, %v740
        %v773 = vadd.f32 %v772, %v741
        %v774 = vadd.f32 %v773, %v742
        %v775 = vadd.f32 %v774, %v743
        %v776 = vadd.f32 %v775, %v744
        %v777 = vadd.f32 %v776, %v745
        %v778 = vadd.f32 %v777, %v746
        %v779 = vadd.f32 %v778, %v747
        %v780 = vadd.f32 %v779, %v748
        %v781 = vadd.f32 %v780, %v749
        %v782 = vadd.f32 %v781, %v750
        %v783 = vadd.f32 %v782, %v751
        %v784 = vadd.f32 %v783, %v752
        %v785 = vadd.f32 %v784, %v753
        %v786 = vadd.f32 %v785, %v754
        %v787 = vadd.f32 %v786, %v755
        %v788 = vadd.f32 %v787, %v756
        %v789 = vadd.f32 %v788, %v757
        %v790 = vadd.f32 %v789, %v758
        %v791 = vadd.f32 %v790, %v759
        %v792 = vadd.f32 %v791, %v760
        %v793 = vadd.f32 %v792, %v761
        %v794 = vadd.f32 %v793, %v762
        %v795 = vadd.f32 %v794, %v763
        %v796 = vadd.f32 %v795, %v764
        %v797 = vadd.f32 %v796, %v765
        %v798 = vadd.f32 %v797, %v766
        %v799 = vrot.slane %v798, 4
        %v800 = vadd.f32 %v798, %v799
        %v801 = vrot.slane %v800, 2
        %v802 = vadd.f32 %v800, %v801
        %v803 = vrot.slane %v802, 1
        %v804 = vadd.f32 %v802, %v803
        %v805 = vadd.f32 %v767, %v804
        %806 = vst [vmem:[#allocation2] sm:$0x1] %v805
        // Predicated region
        $region53: #{dann_fused_forward.1} parent=47 // pred_check
          %p807 = pneg %p377
        $region54: #{dann_fused_forward.1} parent=47 // pred_check_branch
          %809 = sbr.rel (%p807) target = $region56
        $region55: #{dann_fused_forward.1} parent=47 // pred_region
          %v810 = vld [vmem:[#allocation2] sm:$0x1]
          %v811 = vmul.f32 %v810, 0.00390625
          %812 = vst [vmem:[%s351] sm:$0x1] %v811
          %v813 = vpack.c.bf16 %v811, %v811
          %v814 = vld [vmem:[%s3] sm:$0xff]
          %v815 = vld [vmem:[%s3 + $0x8] sm:$0xff]
          %v816 = vld [vmem:[%s3 + $0x10] sm:$0xf]
          %v817 = vld [vmem:[%s3 + $0x14] sm:$0xff]
          %v818 = vld [vmem:[%s3 + $0x1c] sm:$0xff]
          %v819 = vld [vmem:[%s3 + $0x24] sm:$0xf]
          %v820 = vld [vmem:[%s3 + $0x28] sm:$0xff]
          %v821 = vld [vmem:[%s3 + $0x30] sm:$0xff]
          %v822 = vld [vmem:[%s3 + $0x38] sm:$0xf]
          %v823 = vld [vmem:[%s3 + $0x3c] sm:$0xff]
          %v824 = vld [vmem:[%s3 + $0x44] sm:$0xff]
          %v825 = vld [vmem:[%s3 + $0x4c] sm:$0xf]
          %v826 = vld [vmem:[%s3 + $0x50] sm:$0xff]
          %v827 = vld [vmem:[%s3 + $0x58] sm:$0xff]
          %v828 = vld [vmem:[%s3 + $0x60] sm:$0xf]
          %v829 = vld [vmem:[%s3 + $0x64] sm:$0xff]
          %v830 = vld [vmem:[%s3 + $0x6c] sm:$0xff]
          %v831 = vld [vmem:[%s3 + $0x74] sm:$0xf]
          %v832 = vld [vmem:[%s3 + $0x78] sm:$0xff]
          %v833 = vld [vmem:[%s3 + $0x80] sm:$0xff]
          %v834 = vld [vmem:[%s3 + $0x88] sm:$0xf]
          %v835 = vld [vmem:[%s3 + $0x8c] sm:$0xff]
          %v836 = vld [vmem:[%s3 + $0x94] sm:$0xff]
          %v837 = vld [vmem:[%s3 + $0x9c] sm:$0xf]
          %v838 = vld [vmem:[%s3 + $0xa0] sm:$0xff]
          %v839 = vld [vmem:[%s3 + $0xa8] sm:$0xff]
          %v840 = vld [vmem:[%s3 + $0xb0] sm:$0xf]
          %v841 = vld [vmem:[%s3 + $0xb4] sm:$0xff]
          %v842 = vld [vmem:[%s3 + $0xbc] sm:$0xff]
          %v843 = vld [vmem:[%s3 + $0xc4] sm:$0xf]
          %v844 = vld [vmem:[%s3 + $0xc8] sm:$0xff]
          %v845 = vld [vmem:[%s3 + $0xd0] sm:$0xff]
          %v846 = vld [vmem:[%s3 + $0xd8] sm:$0xf]
          %v847 = vld [vmem:[%s3 + $0xdc] sm:$0xff]
          %v848 = vld [vmem:[%s3 + $0xe4] sm:$0xff]
          %v849 = vld [vmem:[%s3 + $0xec] sm:$0xf]
          %v850 = vld [vmem:[%s3 + $0xf0] sm:$0xff]
          %v851 = vld [vmem:[%s3 + $0xf8] sm:$0xff]
          %v852 = vld [vmem:[%s3 + $0x100] sm:$0xf]
          %v853 = vld [vmem:[%s3 + $0x104] sm:$0xff]
          %v854 = vld [vmem:[%s3 + $0x10c] sm:$0xff]
          %v855 = vld [vmem:[%s3 + $0x114] sm:$0xf]
          %v856 = vld [vmem:[%s3 + $0x118] sm:$0xff]
          %v857 = vld [vmem:[%s3 + $0x120] sm:$0xff]
          %v858 = vld [vmem:[%s3 + $0x128] sm:$0xf]
          %v859 = vld [vmem:[%s3 + $0x12c] sm:$0xff]
          %v860 = vld [vmem:[%s3 + $0x134] sm:$0xff]
          %v861 = vld [vmem:[%s3 + $0x13c] sm:$0xf]
          %v862 = vld [vmem:[%s4] sm:$0x1f]
          %v911 = vunpack.c.l.b16 %v814
          %v912 = vunpack.c.h.b16 %v814
          %v913 = vunpack.c.l.b16 %v815
          %v914 = vunpack.c.h.b16 %v815
          %v915 = vunpack.c.l.b16 %v816
          %v916 = vunpack.c.l.b16 %v817
          %v917 = vunpack.c.h.b16 %v817
          %v918 = vunpack.c.l.b16 %v818
          %v919 = vunpack.c.h.b16 %v818
          %v920 = vunpack.c.l.b16 %v819
          %v921 = vunpack.c.l.b16 %v820
          %v922 = vunpack.c.h.b16 %v820
          %v923 = vunpack.c.l.b16 %v821
          %v924 = vunpack.c.h.b16 %v821
          %v925 = vunpack.c.l.b16 %v822
          %v926 = vunpack.c.l.b16 %v823
          %v927 = vunpack.c.h.b16 %v823
          %v928 = vunpack.c.l.b16 %v824
          %v929 = vunpack.c.h.b16 %v824
          %v930 = vunpack.c.l.b16 %v825
          %v931 = vunpack.c.l.b16 %v826
          %v932 = vunpack.c.h.b16 %v826
          %v933 = vunpack.c.l.b16 %v827
          %v934 = vunpack.c.h.b16 %v827
          %v935 = vunpack.c.l.b16 %v828
          %v936 = vunpack.c.l.b16 %v829
          %v937 = vunpack.c.h.b16 %v829
          %v938 = vunpack.c.l.b16 %v830
          %v939 = vunpack.c.h.b16 %v830
          %v940 = vunpack.c.l.b16 %v831
          %v941 = vunpack.c.l.b16 %v832
          %v942 = vunpack.c.h.b16 %v832
          %v943 = vunpack.c.l.b16 %v833
          %v944 = vunpack.c.h.b16 %v833
          %v945 = vunpack.c.l.b16 %v834
          %v946 = vunpack.c.l.b16 %v835
          %v947 = vunpack.c.h.b16 %v835
          %v948 = vunpack.c.l.b16 %v836
          %v949 = vunpack.c.h.b16 %v836
          %v950 = vunpack.c.l.b16 %v837
          %v951 = vunpack.c.l.b16 %v838
          %v952 = vunpack.c.h.b16 %v838
          %v953 = vunpack.c.l.b16 %v839
          %v954 = vunpack.c.h.b16 %v839
          %v955 = vunpack.c.l.b16 %v840
          %v956 = vunpack.c.l.b16 %v841
          %v957 = vunpack.c.h.b16 %v841
          %v958 = vunpack.c.l.b16 %v842
          %v959 = vunpack.c.h.b16 %v842
          %v960 = vunpack.c.l.b16 %v843
          %v961 = vunpack.c.l.b16 %v844
          %v962 = vunpack.c.h.b16 %v844
          %v963 = vunpack.c.l.b16 %v845
          %v964 = vunpack.c.h.b16 %v845
          %v965 = vunpack.c.l.b16 %v846
          %v966 = vunpack.c.l.b16 %v847
          %v967 = vunpack.c.h.b16 %v847
          %v968 = vunpack.c.l.b16 %v848
          %v969 = vunpack.c.h.b16 %v848
          %v970 = vunpack.c.l.b16 %v849
          %v971 = vunpack.c.l.b16 %v850
          %v972 = vunpack.c.h.b16 %v850
          %v973 = vunpack.c.l.b16 %v851
          %v974 = vunpack.c.h.b16 %v851
          %v975 = vunpack.c.l.b16 %v852
          %v976 = vunpack.c.l.b16 %v853
          %v977 = vunpack.c.h.b16 %v853
          %v978 = vunpack.c.l.b16 %v854
          %v979 = vunpack.c.h.b16 %v854
          %v980 = vunpack.c.l.b16 %v855
          %v981 = vunpack.c.l.b16 %v856
          %v982 = vunpack.c.h.b16 %v856
          %v983 = vunpack.c.l.b16 %v857
          %v984 = vunpack.c.h.b16 %v857
          %v985 = vunpack.c.l.b16 %v858
          %v986 = vunpack.c.l.b16 %v859
          %v987 = vunpack.c.h.b16 %v859
          %v988 = vunpack.c.l.b16 %v860
          %v989 = vunpack.c.h.b16 %v860
          %v990 = vunpack.c.l.b16 %v861
          %v991 = vpack.c.b16 %v916, %v911
          %v992 = vpack.c.b16 %v917, %v912
          %v993 = vpack.c.b16 %v918, %v913
          %v994 = vpack.c.b16 %v919, %v914
          %v995 = vpack.c.b16 %v920, %v915
          %v996 = vpack.c.b16 %v926, %v921
          %v997 = vpack.c.b16 %v927, %v922
          %v998 = vpack.c.b16 %v928, %v923
          %v999 = vpack.c.b16 %v929, %v924
          %v1000 = vpack.c.b16 %v930, %v925
          %v1001 = vpack.c.b16 %v936, %v931
          %v1002 = vpack.c.b16 %v937, %v932
          %v1003 = vpack.c.b16 %v938, %v933
          %v1004 = vpack.c.b16 %v939, %v934
          %v1005 = vpack.c.b16 %v940, %v935
          %v1006 = vpack.c.b16 %v946, %v941
          %v1007 = vpack.c.b16 %v947, %v942
          %v1008 = vpack.c.b16 %v948, %v943
          %v1009 = vpack.c.b16 %v949, %v944
          %v1010 = vpack.c.b16 %v950, %v945
          %v1011 = vpack.c.b16 %v956, %v951
          %v1012 = vpack.c.b16 %v957, %v952
          %v1013 = vpack.c.b16 %v958, %v953
          %v1014 = vpack.c.b16 %v959, %v954
          %v1015 = vpack.c.b16 %v960, %v955
          %v1016 = vpack.c.b16 %v966, %v961
          %v1017 = vpack.c.b16 %v967, %v962
          %v1018 = vpack.c.b16 %v968, %v963
          %v1019 = vpack.c.b16 %v969, %v964
          %v1020 = vpack.c.b16 %v970, %v965
          %v1021 = vpack.c.b16 %v976, %v971
          %v1022 = vpack.c.b16 %v977, %v972
          %v1023 = vpack.c.b16 %v978, %v973
          %v1024 = vpack.c.b16 %v979, %v974
          %v1025 = vpack.c.b16 %v980, %v975
          %v1026 = vpack.c.b16 %v986, %v981
          %v1027 = vpack.c.b16 %v987, %v982
          %v1028 = vpack.c.b16 %v988, %v983
          %v1029 = vpack.c.b16 %v989, %v984
          %v1030 = vpack.c.b16 %v990, %v985
          %v1072 = vlaneseq
          %v1073 = vshrl.u32 %v1072, 7
          %v1074 = vsub.s32 0, %v1073
          %v1075 = vrot.slane %v862, %v1074
          %v1076 = vlaneseq
          %v1077 = vshrl.u32 %v1076, 7
          %v1078 = vsub.s32 1, %v1077
          %v1079 = vrot.slane %v862, %v1078
          %v1080 = vlaneseq
          %v1081 = vshrl.u32 %v1080, 7
          %v1082 = vsub.s32 2, %v1081
          %v1083 = vrot.slane %v862, %v1082
          %v1084 = vlaneseq
          %v1085 = vshrl.u32 %v1084, 7
          %v1086 = vsub.s32 3, %v1085
          %v1087 = vrot.slane %v862, %v1086
          %v1088 = vlaneseq
          %v1089 = vshrl.u32 %v1088, 7
          %v1090 = vsub.s32 4, %v1089
          %v1091 = vrot.slane %v862, %v1090
          %1097 = vmatprep.subr.bf16.mxu0 %v992
          %1098 = vmatpush1.bf16.msra.mxu0 %v991
          %1099 = vmatprep.subr.bf16.mxu0 %v997
          %1100 = vmatpush1.bf16.msra.mxu0 %v996
          %1101 = vmatprep.subr.bf16.mxu0 %v1002
          %1102 = vmatpush1.bf16.msra.mxu0 %v1001
          %1103 = vmatprep.subr.bf16.mxu0 %v1007
          %1104 = vmatpush1.bf16.msra.mxu0 %v1006
          %1105 = vmatprep.subr.bf16.mxu0 %v1012
          %1106 = vmatpush1.bf16.msra.mxu0 %v1011
          %1107 = vmatprep.subr.bf16.mxu0 %v1017
          %1108 = vmatpush1.bf16.msra.mxu0 %v1016
          %1109 = vmatprep.subr.bf16.mxu0 %v1022
          %1110 = vmatpush1.bf16.msra.mxu0 %v1021
          %1111 = vmatprep.subr.bf16.mxu0 %v1027
          %1112 = vmatpush1.bf16.msra.mxu0 %v1026
          %1113 = vmatprep.subr.bf16.mxu0 0
          %1114 = vmatpush1.bf16.msra.mxu0 0
          %1115 = vmatprep.subr.bf16.mxu0 0
          %1116 = vmatpush1.bf16.msra.mxu0 0
          %1117 = vmatprep.subr.bf16.mxu0 0
          %1118 = vmatpush1.bf16.msra.mxu0 0
          %1119 = vmatprep.subr.bf16.mxu0 0
          %1120 = vmatpush1.bf16.msra.mxu0 0
          %1121 = vmatprep.subr.bf16.mxu0 0
          %1122 = vmatpush1.bf16.msra.mxu0 0
          %1123 = vmatprep.subr.bf16.mxu0 0
          %1124 = vmatpush1.bf16.msra.mxu0 0
          %1125 = vmatprep.subr.bf16.mxu0 0
          %1126 = vmatpush1.bf16.msra.mxu0 0
          %1127 = vmatprep.subr.bf16.mxu0 0
          %1128 = vmatpush1.bf16.msra.mxu0 0
          %1129 = vmatprep.mubr.bf16.mxu0 0
          %1130 = vmatmul.mubr.bf16.gmra.mrb[0].mxu0 %v813
          %v1131 = vpop.f32.mrb[0].mxu0
          %v1132 = vadd.f32 %v1075, %v1131
          %v1133 = vpop.f32.mrb[0].mxu0
          %v1134 = vadd.f32 %v1079, %v1133
          %v1135 = vpop.f32.mrb[0].mxu0
          %v1136 = vpop.f32.mrb[0].mxu0
          %1137 = vdwg.mxu0
          %1138 = vmatprep.subr.bf16.mxu0 %v994
          %1139 = vmatpush1.bf16.msra.mxu0 %v993
          %1140 = vmatprep.subr.bf16.mxu0 %v999
          %1141 = vmatpush1.bf16.msra.mxu0 %v998
          %1142 = vmatprep.subr.bf16.mxu0 %v1004
          %1143 = vmatpush1.bf16.msra.mxu0 %v1003
          %1144 = vmatprep.subr.bf16.mxu0 %v1009
          %1145 = vmatpush1.bf16.msra.mxu0 %v1008
          %1146 = vmatprep.subr.bf16.mxu0 %v1014
          %1147 = vmatpush1.bf16.msra.mxu0 %v1013
          %1148 = vmatprep.subr.bf16.mxu0 %v1019
          %1149 = vmatpush1.bf16.msra.mxu0 %v1018
          %1150 = vmatprep.subr.bf16.mxu0 %v1024
          %1151 = vmatpush1.bf16.msra.mxu0 %v1023
          %1152 = vmatprep.subr.bf16.mxu0 %v1029
          %1153 = vmatpush1.bf16.msra.mxu0 %v1028
          %1154 = vmatprep.subr.bf16.mxu0 0
          %1155 = vmatpush1.bf16.msra.mxu0 0
          %1156 = vmatprep.subr.bf16.mxu0 0
          %1157 = vmatpush1.bf16.msra.mxu0 0
          %1158 = vmatprep.subr.bf16.mxu0 0
          %1159 = vmatpush1.bf16.msra.mxu0 0
          %1160 = vmatprep.subr.bf16.mxu0 0
          %1161 = vmatpush1.bf16.msra.mxu0 0
          %1162 = vmatprep.subr.bf16.mxu0 0
          %1163 = vmatpush1.bf16.msra.mxu0 0
          %1164 = vmatprep.subr.bf16.mxu0 0
          %1165 = vmatpush1.bf16.msra.mxu0 0
          %1166 = vmatprep.subr.bf16.mxu0 0
          %1167 = vmatpush1.bf16.msra.mxu0 0
          %1168 = vmatprep.subr.bf16.mxu0 0
          %1169 = vmatpush1.bf16.msra.mxu0 0
          %1170 = vmatprep.mubr.bf16.mxu0 0
          %1171 = vmatmul.mubr.bf16.gmra.mrb[0].mxu0 %v813
          %v1172 = vpop.f32.mrb[0].mxu0
          %v1173 = vadd.f32 %v1083, %v1172
          %v1174 = vpop.f32.mrb[0].mxu0
          %v1175 = vadd.f32 %v1087, %v1174
          %v1176 = vpop.f32.mrb[0].mxu0
          %v1177 = vpop.f32.mrb[0].mxu0
          %1178 = vdwg.mxu0
          %1179 = vmatprep.subr.bf16.mxu0 0
          %1180 = vmatpush1.bf16.msra.mxu0 %v995
          %1181 = vmatprep.subr.bf16.mxu0 0
          %1182 = vmatpush1.bf16.msra.mxu0 %v1000
          %1183 = vmatprep.subr.bf16.mxu0 0
          %1184 = vmatpush1.bf16.msra.mxu0 %v1005
          %1185 = vmatprep.subr.bf16.mxu0 0
          %1186 = vmatpush1.bf16.msra.mxu0 %v1010
          %1187 = vmatprep.subr.bf16.mxu0 0
          %1188 = vmatpush1.bf16.msra.mxu0 %v1015
          %1189 = vmatprep.subr.bf16.mxu0 0
          %1190 = vmatpush1.bf16.msra.mxu0 %v1020
          %1191 = vmatprep.subr.bf16.mxu0 0
          %1192 = vmatpush1.bf16.msra.mxu0 %v1025
          %1193 = vmatprep.subr.bf16.mxu0 0
          %1194 = vmatpush1.bf16.msra.mxu0 %v1030
          %1195 = vmatprep.subr.bf16.mxu0 0
          %1196 = vmatpush1.bf16.msra.mxu0 0
          %1197 = vmatprep.subr.bf16.mxu0 0
          %1198 = vmatpush1.bf16.msra.mxu0 0
          %1199 = vmatprep.subr.bf16.mxu0 0
          %1200 = vmatpush1.bf16.msra.mxu0 0
          %1201 = vmatprep.subr.bf16.mxu0 0
          %1202 = vmatpush1.bf16.msra.mxu0 0
          %1203 = vmatprep.subr.bf16.mxu0 0
          %1204 = vmatpush1.bf16.msra.mxu0 0
          %1205 = vmatprep.subr.bf16.mxu0 0
          %1206 = vmatpush1.bf16.msra.mxu0 0
          %1207 = vmatprep.subr.bf16.mxu0 0
          %1208 = vmatpush1.bf16.msra.mxu0 0
          %1209 = vmatprep.subr.bf16.mxu0 0
          %1210 = vmatpush1.bf16.msra.mxu0 0
          %1211 = vmatprep.mubr.bf16.mxu0 0
          %1212 = vmatmul.mubr.bf16.gmra.mrb[0].mxu0 %v813
          %v1213 = vpop.f32.mrb[0].mxu0
          %v1214 = vadd.f32 %v1091, %v1213
          %v1215 = vpop.f32.mrb[0].mxu0
          %v1216 = vpop.f32.mrb[0].mxu0
          %v1217 = vpop.f32.mrb[0].mxu0
          %1218 = vdwg.mxu0
          %v1219 = vmul.f32 %v1132, 0.2
          %v1220 = vxor.u32 %v1219, 2147483648
          %v1221 = vmul.f32 %v1220, 1.442695
          %v1222 = vpow.pop %v1221
          %v1223 = vadd.f32 %v1222, 1.0
          %v1224 = vrcp.pop %v1223
          %v1225 = vmul.f32 1.0, %v1224
          %1226 = vst [vmem:[%s375] sm:$0x1] %v1225
          %v1227 = vmax.f32 %v1134, 0.0
          %v1228 = vmax.f32 %v1173, 0.0
          %v1229 = vmax.f32 %v1175, 0.0
          %v1230 = vmax.f32 %v1214, 0.0
          %v1231 = vpack.c.bf16 %v1227, %v1227
          %v1232 = vpack.c.bf16 %v1228, %v1228
          %v1233 = vpack.c.bf16 %v1229, %v1229
          %v1234 = vpack.c.bf16 %v1230, %v1230
          %v1235 = vld [vmem:[%s5] sm:$0xf]
          %v1236 = vld [vmem:[%s5 + $0x4] sm:$0xf]
          %v1237 = vld [vmem:[%s5 + $0x8] sm:$0xf]
          %v1238 = vld [vmem:[%s5 + $0xc] sm:$0xf]
          %v1239 = vld [vmem:[%s5 + $0x10] sm:$0xf]
          %v1240 = vld [vmem:[%s5 + $0x14] sm:$0xf]
          %v1241 = vld [vmem:[%s5 + $0x18] sm:$0xf]
          %v1242 = vld [vmem:[%s5 + $0x1c] sm:$0xf]
          %v1243 = vld [vmem:[%s5 + $0x20] sm:$0xf]
          %v1244 = vld [vmem:[%s5 + $0x24] sm:$0xf]
          %v1245 = vld [vmem:[%s5 + $0x28] sm:$0xf]
          %v1246 = vld [vmem:[%s5 + $0x2c] sm:$0xf]
          %v1247 = vld [vmem:[%s5 + $0x30] sm:$0xf]
          %v1248 = vld [vmem:[%s5 + $0x34] sm:$0xf]
          %v1249 = vld [vmem:[%s5 + $0x38] sm:$0xf]
          %v1250 = vld [vmem:[%s5 + $0x3c] sm:$0xf]
          %v1251 = vld [vmem:[%s5 + $0x40] sm:$0xf]
          %v1252 = vld [vmem:[%s5 + $0x44] sm:$0xf]
          %v1253 = vld [vmem:[%s5 + $0x48] sm:$0xf]
          %v1254 = vld [vmem:[%s5 + $0x4c] sm:$0xf]
          %v1255 = vld [vmem:[%s5 + $0x50] sm:$0xf]
          %v1256 = vld [vmem:[%s5 + $0x54] sm:$0xf]
          %v1257 = vld [vmem:[%s5 + $0x58] sm:$0xf]
          %v1258 = vld [vmem:[%s5 + $0x5c] sm:$0xf]
          %v1259 = vld [vmem:[%s5 + $0x60] sm:$0xf]
          %v1260 = vld [vmem:[%s5 + $0x64] sm:$0xf]
          %v1261 = vld [vmem:[%s5 + $0x68] sm:$0xf]
          %v1262 = vld [vmem:[%s5 + $0x6c] sm:$0xf]
          %v1263 = vld [vmem:[%s5 + $0x70] sm:$0xf]
          %v1264 = vld [vmem:[%s5 + $0x74] sm:$0xf]
          %v1265 = vld [vmem:[%s5 + $0x78] sm:$0xf]
          %v1266 = vld [vmem:[%s5 + $0x7c] sm:$0xf]
          %v1267 = vld [vmem:[%s5 + $0x80] sm:$0xf]
          %v1268 = vld [vmem:[%s5 + $0x84] sm:$0xf]
          %v1269 = vld [vmem:[%s5 + $0x88] sm:$0xf]
          %v1270 = vld [vmem:[%s5 + $0x8c] sm:$0xf]
          %v1271 = vld [vmem:[%s5 + $0x90] sm:$0xf]
          %v1272 = vld [vmem:[%s5 + $0x94] sm:$0xf]
          %v1273 = vld [vmem:[%s5 + $0x98] sm:$0xf]
          %v1274 = vld [vmem:[%s5 + $0x9c] sm:$0xf]
          %v1275 = vld [vmem:[%s5 + $0xa0] sm:$0xf]
          %v1276 = vld [vmem:[%s5 + $0xa4] sm:$0xf]
          %v1277 = vld [vmem:[%s5 + $0xa8] sm:$0xf]
          %v1278 = vld [vmem:[%s5 + $0xac] sm:$0xf]
          %v1279 = vld [vmem:[%s5 + $0xb0] sm:$0xf]
          %v1280 = vld [vmem:[%s5 + $0xb4] sm:$0xf]
          %v1281 = vld [vmem:[%s5 + $0xb8] sm:$0xf]
          %v1282 = vld [vmem:[%s5 + $0xbc] sm:$0xf]
          %v1283 = vld [vmem:[%s5 + $0xc0] sm:$0xf]
          %v1284 = vld [vmem:[%s5 + $0xc4] sm:$0xf]
          %v1285 = vld [vmem:[%s5 + $0xc8] sm:$0xf]
          %v1286 = vld [vmem:[%s5 + $0xcc] sm:$0xf]
          %v1287 = vld [vmem:[%s5 + $0xd0] sm:$0xf]
          %v1288 = vld [vmem:[%s5 + $0xd4] sm:$0xf]
          %v1289 = vld [vmem:[%s5 + $0xd8] sm:$0xf]
          %v1290 = vld [vmem:[%s5 + $0xdc] sm:$0xf]
          %v1291 = vld [vmem:[%s5 + $0xe0] sm:$0xf]
          %v1292 = vld [vmem:[%s5 + $0xe4] sm:$0xf]
          %v1293 = vld [vmem:[%s5 + $0xe8] sm:$0xf]
          %v1294 = vld [vmem:[%s5 + $0xec] sm:$0xf]
          %v1295 = vld [vmem:[%s5 + $0xf0] sm:$0xf]
          %v1296 = vld [vmem:[%s5 + $0xf4] sm:$0xf]
          %v1297 = vld [vmem:[%s5 + $0xf8] sm:$0xf]
          %v1298 = vld [vmem:[%s5 + $0xfc] sm:$0xf]
          %v1299 = vld [vmem:[%s6] sm:$0x1]
          %v1364 = vunpack.c.l.b16 %v1235
          %v1365 = vunpack.c.l.b16 %v1236
          %v1366 = vunpack.c.l.b16 %v1237
          %v1367 = vunpack.c.l.b16 %v1238
          %v1368 = vunpack.c.l.b16 %v1239
          %v1369 = vunpack.c.l.b16 %v1240
          %v1370 = vunpack.c.l.b16 %v1241
          %v1371 = vunpack.c.l.b16 %v1242
          %v1372 = vunpack.c.l.b16 %v1243
          %v1373 = vunpack.c.l.b16 %v1244
          %v1374 = vunpack.c.l.b16 %v1245
          %v1375 = vunpack.c.l.b16 %v1246
          %v1376 = vunpack.c.l.b16 %v1247
          %v1377 = vunpack.c.l.b16 %v1248
          %v1378 = vunpack.c.l.b16 %v1249
          %v1379 = vunpack.c.l.b16 %v1250
          %v1380 = vunpack.c.l.b16 %v1251
          %v1381 = vunpack.c.l.b16 %v1252
          %v1382 = vunpack.c.l.b16 %v1253
          %v1383 = vunpack.c.l.b16 %v1254
          %v1384 = vunpack.c.l.b16 %v1255
          %v1385 = vunpack.c.l.b16 %v1256
          %v1386 = vunpack.c.l.b16 %v1257
          %v1387 = vunpack.c.l.b16 %v1258
          %v1388 = vunpack.c.l.b16 %v1259
          %v1389 = vunpack.c.l.b16 %v1260
          %v1390 = vunpack.c.l.b16 %v1261
          %v1391 = vunpack.c.l.b16 %v1262
          %v1392 = vunpack.c.l.b16 %v1263
          %v1393 = vunpack.c.l.b16 %v1264
          %v1394 = vunpack.c.l.b16 %v1265
          %v1395 = vunpack.c.l.b16 %v1266
          %v1396 = vunpack.c.l.b16 %v1267
          %v1397 = vunpack.c.l.b16 %v1268
          %v1398 = vunpack.c.l.b16 %v1269
          %v1399 = vunpack.c.l.b16 %v1270
          %v1400 = vunpack.c.l.b16 %v1271
          %v1401 = vunpack.c.l.b16 %v1272
          %v1402 = vunpack.c.l.b16 %v1273
          %v1403 = vunpack.c.l.b16 %v1274
          %v1404 = vunpack.c.l.b16 %v1275
          %v1405 = vunpack.c.l.b16 %v1276
          %v1406 = vunpack.c.l.b16 %v1277
          %v1407 = vunpack.c.l.b16 %v1278
          %v1408 = vunpack.c.l.b16 %v1279
          %v1409 = vunpack.c.l.b16 %v1280
          %v1410 = vunpack.c.l.b16 %v1281
          %v1411 = vunpack.c.l.b16 %v1282
          %v1412 = vunpack.c.l.b16 %v1283
          %v1413 = vunpack.c.l.b16 %v1284
          %v1414 = vunpack.c.l.b16 %v1285
          %v1415 = vunpack.c.l.b16 %v1286
          %v1416 = vunpack.c.l.b16 %v1287
          %v1417 = vunpack.c.l.b16 %v1288
          %v1418 = vunpack.c.l.b16 %v1289
          %v1419 = vunpack.c.l.b16 %v1290
          %v1420 = vunpack.c.l.b16 %v1291
          %v1421 = vunpack.c.l.b16 %v1292
          %v1422 = vunpack.c.l.b16 %v1293
          %v1423 = vunpack.c.l.b16 %v1294
          %v1424 = vunpack.c.l.b16 %v1295
          %v1425 = vunpack.c.l.b16 %v1296
          %v1426 = vunpack.c.l.b16 %v1297
          %v1427 = vunpack.c.l.b16 %v1298
          %v1428 = vpack.c.b16 %v1365, %v1364
          %v1429 = vpack.c.b16 %v1367, %v1366
          %v1430 = vpack.c.b16 %v1369, %v1368
          %v1431 = vpack.c.b16 %v1371, %v1370
          %v1432 = vpack.c.b16 %v1373, %v1372
          %v1433 = vpack.c.b16 %v1375, %v1374
          %v1434 = vpack.c.b16 %v1377, %v1376
          %v1435 = vpack.c.b16 %v1379, %v1378
          %v1436 = vpack.c.b16 %v1381, %v1380
          %v1437 = vpack.c.b16 %v1383, %v1382
          %v1438 = vpack.c.b16 %v1385, %v1384
          %v1439 = vpack.c.b16 %v1387, %v1386
          %v1440 = vpack.c.b16 %v1389, %v1388
          %v1441 = vpack.c.b16 %v1391, %v1390
          %v1442 = vpack.c.b16 %v1393, %v1392
          %v1443 = vpack.c.b16 %v1395, %v1394
          %v1444 = vpack.c.b16 %v1397, %v1396
          %v1445 = vpack.c.b16 %v1399, %v1398
          %v1446 = vpack.c.b16 %v1401, %v1400
          %v1447 = vpack.c.b16 %v1403, %v1402
          %v1448 = vpack.c.b16 %v1405, %v1404
          %v1449 = vpack.c.b16 %v1407, %v1406
          %v1450 = vpack.c.b16 %v1409, %v1408
          %v1451 = vpack.c.b16 %v1411, %v1410
          %v1452 = vpack.c.b16 %v1413, %v1412
          %v1453 = vpack.c.b16 %v1415, %v1414
          %v1454 = vpack.c.b16 %v1417, %v1416
          %v1455 = vpack.c.b16 %v1419, %v1418
          %v1456 = vpack.c.b16 %v1421, %v1420
          %v1457 = vpack.c.b16 %v1423, %v1422
          %v1458 = vpack.c.b16 %v1425, %v1424
          %v1459 = vpack.c.b16 %v1427, %v1426
          %1492 = vmatprep.subr.bf16.mxu0 0
          %1493 = vmatpush1.bf16.msra.mxu0 %v1428
          %1494 = vmatprep.subr.bf16.mxu0 0
          %1495 = vmatpush1.bf16.msra.mxu0 %v1429
          %1496 = vmatprep.subr.bf16.mxu0 0
          %1497 = vmatpush1.bf16.msra.mxu0 %v1430
          %1498 = vmatprep.subr.bf16.mxu0 0
          %1499 = vmatpush1.bf16.msra.mxu0 %v1431
          %1500 = vmatprep.subr.bf16.mxu0 0
          %1501 = vmatpush1.bf16.msra.mxu0 %v1432
          %1502 = vmatprep.subr.bf16.mxu0 0
          %1503 = vmatpush1.bf16.msra.mxu0 %v1433
          %1504 = vmatprep.subr.bf16.mxu0 0
          %1505 = vmatpush1.bf16.msra.mxu0 %v1434
          %1506 = vmatprep.subr.bf16.mxu0 0
          %1507 = vmatpush1.bf16.msra.mxu0 %v1435
          %1508 = vmatprep.subr.bf16.mxu0 0
          %1509 = vmatpush1.bf16.msra.mxu0 %v1436
          %1510 = vmatprep.subr.bf16.mxu0 0
          %1511 = vmatpush1.bf16.msra.mxu0 %v1437
          %1512 = vmatprep.subr.bf16.mxu0 0
          %1513 = vmatpush1.bf16.msra.mxu0 %v1438
          %1514 = vmatprep.subr.bf16.mxu0 0
          %1515 = vmatpush1.bf16.msra.mxu0 %v1439
          %1516 = vmatprep.subr.bf16.mxu0 0
          %1517 = vmatpush1.bf16.msra.mxu0 %v1440
          %1518 = vmatprep.subr.bf16.mxu0 0
          %1519 = vmatpush1.bf16.msra.mxu0 %v1441
          %1520 = vmatprep.subr.bf16.mxu0 0
          %1521 = vmatpush1.bf16.msra.mxu0 %v1442
          %1522 = vmatprep.subr.bf16.mxu0 0
          %1523 = vmatpush1.bf16.msra.mxu0 %v1443
          %1524 = vmatprep.mubr.bf16.mxu0 %v1232
          %1525 = vmatmul.mubr.bf16.gmra.mrb[0].mxu0 %v1231
          %v1526 = vpop.f32.mrb[0].mxu0
          %v1527 = vadd.f32 %v1299, %v1526
          %v1528 = vpop.f32.mrb[0].mxu0
          %v1529 = vpop.f32.mrb[0].mxu0
          %v1530 = vpop.f32.mrb[0].mxu0
          %1531 = vdwg.mxu0
          %1532 = vmatprep.subr.bf16.mxu0 0
          %1533 = vmatpush1.bf16.msra.mxu0 %v1444
          %1534 = vmatprep.subr.bf16.mxu0 0
          %1535 = vmatpush1.bf16.msra.mxu0 %v1445
          %1536 = vmatprep.subr.bf16.mxu0 0
          %1537 = vmatpush1.bf16.msra.mxu0 %v1446
          %1538 = vmatprep.subr.bf16.mxu0 0
          %1539 = vmatpush1.bf16.msra.mxu0 %v1447
          %1540 = vmatprep.subr.bf16.mxu0 0
          %1541 = vmatpush1.bf16.msra.mxu0 %v1448
          %1542 = vmatprep.subr.bf16.mxu0 0
          %1543 = vmatpush1.bf16.msra.mxu0 %v1449
          %1544 = vmatprep.subr.bf16.mxu0 0
          %1545 = vmatpush1.bf16.msra.mxu0 %v1450
          %1546 = vmatprep.subr.bf16.mxu0 0
          %1547 = vmatpush1.bf16.msra.mxu0 %v1451
          %1548 = vmatprep.subr.bf16.mxu0 0
          %1549 = vmatpush1.bf16.msra.mxu0 %v1452
          %1550 = vmatprep.subr.bf16.mxu0 0
          %1551 = vmatpush1.bf16.msra.mxu0 %v1453
          %1552 = vmatprep.subr.bf16.mxu0 0
          %1553 = vmatpush1.bf16.msra.mxu0 %v1454
          %1554 = vmatprep.subr.bf16.mxu0 0
          %1555 = vmatpush1.bf16.msra.mxu0 %v1455
          %1556 = vmatprep.subr.bf16.mxu0 0
          %1557 = vmatpush1.bf16.msra.mxu0 %v1456
          %1558 = vmatprep.subr.bf16.mxu0 0
          %1559 = vmatpush1.bf16.msra.mxu0 %v1457
          %1560 = vmatprep.subr.bf16.mxu0 0
          %1561 = vmatpush1.bf16.msra.mxu0 %v1458
          %1562 = vmatprep.subr.bf16.mxu0 0
          %1563 = vmatpush1.bf16.msra.mxu0 %v1459
          %1564 = vmatprep.mubr.bf16.mxu0 %v1234
          %1565 = vmatmul.mubr.bf16.gmra.mrb[0].mxu0 %v1233
          %v1566 = vpop.f32.mrb[0].mxu0
          %v1567 = vadd.f32 %v1527, %v1566
          %v1568 = vpop.f32.mrb[0].mxu0
          %v1569 = vpop.f32.mrb[0].mxu0
          %v1570 = vpop.f32.mrb[0].mxu0
          %1571 = vdwg.mxu0
          %1572 = vst [vmem:[%s362] sm:$0x1] %v1567
        $region56: #{dann_fused_forward.1} parent=47 // pred_fallthru
          _
        %s1573 = sand.u32 %s201, 1
        %s1574 = scalar_lea.sflag [#allocation4], %s1573
        %s1575 = sand.u32 %s201, 1
        %s1576 = scalar_lea.vmem [#allocation3], %s1575
        %p1577 = scmp.lt.s32.totalorder %s31, 1
        %s1578 = scalar_select %p1577, %s31, 1
        %s1579 = scalar_lea.vmem %s8, %s1578
        %s1580 = sand.u32 %s253, 1
        %s1581 = scalar_lea.sflag [#allocation6], %s1580
        %s1582 = sand.u32 %s253, 1
        %s1583 = scalar_lea.vmem [#allocation5], %s1582
        // Predicated region
        $region57: #{dann_fused_forward.1} parent=47 // pred_check
          %p1584 = pneg %p211
        $region58: #{dann_fused_forward.1} parent=47 // pred_check_branch
          %1586 = sbr.rel (%p1584) target = $region60
        $region59: #{dann_fused_forward.1} parent=47 // pred_region
          %s1588 = ssub.s32 16, 16
          %1589 = vsyncadd %s1574, %s1588
          %s1590 = smul.addr %s31, 16
          %s1591 = scalar_lea.hbm %s7, %s1590
          %s1593 = sshll.u32 %s1576, 4
          %s1594 = int_to_ptr.vmem [resolvable:$true] %s1593
          %1596 = dma.vmem_to_hbm [thread:$0]  %s1594, 16, %s1591, %s1574
        $region60: #{dann_fused_forward.1} parent=47 // pred_fallthru
          _
        // Predicated region
        $region61: #{dann_fused_forward.1} parent=47 // pred_check
          %p1597 = pneg %p237
        $region62: #{dann_fused_forward.1} parent=47 // pred_check_branch
          %1599 = sbr.rel (%p1597) target = $region64
        $region63: #{dann_fused_forward.1} parent=47 // pred_region
          _
        $region64: #{dann_fused_forward.1} parent=47 // pred_fallthru
          _
        // Predicated region
        $region65: #{dann_fused_forward.1} parent=47 // pred_check
          %p1600 = pneg %p263
        $region66: #{dann_fused_forward.1} parent=47 // pred_check_branch
          %1602 = sbr.rel (%p1600) target = $region68
        $region67: #{dann_fused_forward.1} parent=47 // pred_region
          %s1604 = ssub.s32 16, 16
          %1605 = vsyncadd %s1581, %s1604
          %s1606 = smul.addr %s31, 16
          %s1607 = scalar_lea.hbm %s9, %s1606
          %s1609 = sshll.u32 %s1583, 4
          %s1610 = int_to_ptr.vmem [resolvable:$true] %s1609
          %1612 = dma.vmem_to_hbm [thread:$0]  %s1610, 16, %s1607, %s1581
        $region68: #{dann_fused_forward.1} parent=47 // pred_fallthru
          _
      $region48: #{dann_fused_forward.1} parent=5 // pred_fallthru
        _
      %p1613 = scmp.le.s32.totalorder 2, %s22
      // Predicated region
      $region69: #{dann_fused_forward.1} parent=5 // pred_check
        %p1614 = pneg %p1613
      $region70: #{dann_fused_forward.1} parent=5 // pred_check_branch
        %1616 = sbr.rel (%p1614) target = $region72
      $region71: #{dann_fused_forward.1} parent=5 // pred_region
        %s1617 = ssub.s32 %s22, 2
        // Predicated region
        $region73: #{dann_fused_forward.1} parent=71 // pred_check
          %p1618 = pneg %p217
        $region74: #{dann_fused_forward.1} parent=71 // pred_check_branch
          %1620 = sbr.rel (%p1618) target = $region76
        $region75: #{dann_fused_forward.1} parent=71 // pred_region
          %s1621 = sand.u32 %s202, 1
          %s1622 = scalar_lea.sflag [#allocation4], %s1621
          %s1623 = sand.u32 %s202, 1
          %s1624 = scalar_lea.vmem [#allocation3], %s1623
          %1625 = dma.done %s1622, 16
        $region76: #{dann_fused_forward.1} parent=71 // pred_fallthru
          _
        // Predicated region
        $region77: #{dann_fused_forward.1} parent=71 // pred_check
          %p1626 = pneg %p243
        $region78: #{dann_fused_forward.1} parent=71 // pred_check_branch
          %1628 = sbr.rel (%p1626) target = $region80
        $region79: #{dann_fused_forward.1} parent=71 // pred_region
          %p1629 = scmp.lt.s32.totalorder %s33, 1
          %s1630 = scalar_select %p1629, %s33, 1
          %s1631 = scalar_lea.vmem %s8, %s1630
        $region80: #{dann_fused_forward.1} parent=71 // pred_fallthru
          _
        // Predicated region
        $region81: #{dann_fused_forward.1} parent=71 // pred_check
          %p1632 = pneg %p269
        $region82: #{dann_fused_forward.1} parent=71 // pred_check_branch
          %1634 = sbr.rel (%p1632) target = $region84
        $region83: #{dann_fused_forward.1} parent=71 // pred_region
          %s1635 = sand.u32 %s254, 1
          %s1636 = scalar_lea.sflag [#allocation6], %s1635
          %s1637 = sand.u32 %s254, 1
          %s1638 = scalar_lea.vmem [#allocation5], %s1637
          %1639 = dma.done %s1636, 16
        $region84: #{dann_fused_forward.1} parent=71 // pred_fallthru
          _
      $region72: #{dann_fused_forward.1} parent=5 // pred_fallthru
        _
    $region6: #{dann_fused_forward.1} parent=1 // loop_footer
      %s26 = sadd.s32 1, %s22
    $region7: #{dann_fused_forward.1} parent=1 // loop_footer_branch
      %21 = sbr.rel target = $region3
    $region8: #{dann_fused_forward.1} parent=1 // loop_exit
      _
    %1640 = vsyncpa [#allocation4], 1
    %s1641 = scalar_lea.sflag [#allocation4], 1
    %1642 = vsyncpa %s1641, 1
    %1643 = vsyncpa [#allocation6], 1
    %s1644 = scalar_lea.sflag [#allocation6], 1
    %1645 = vsyncpa %s1644, 1

</llo_original>
